<compile_context>
chip_gen: v7x
topology: tpu7x:2x2x1
jax: 0.10.0
libtpu: 0.0.40
codegen_flags: <defaults>
</compile_context>

<pallas_src>
import functools

import jax
import jax.numpy as jnp
from jax.experimental import pallas as pl
from jax.experimental.pallas import tpu as pltpu

LN_EPS = 1e-5          # torch.nn.LayerNorm default
NEG_INF = -1e30        # additive mask for padded key columns


# ----------------------------- in-kernel math helpers -----------------------------

def _gelu(x):
    # erf-based GELU (matches torch.nn.GELU default); erf via A&S 7.1.26 (|err| < 1.5e-7).
    z = x * 0.7071067811865476
    a = jnp.abs(z)
    t = 1.0 / (1.0 + 0.3275911 * a)
    poly = t * (0.254829592 + t * (-0.284496736 + t * (1.421413741
                + t * (-1.453152027 + t * 1.061405429))))
    erf_abs = 1.0 - poly * jnp.exp(-a * a)
    erf = jnp.where(z >= 0.0, erf_abs, -erf_abs)
    return 0.5 * x * (1.0 + erf)


def _layer_norm(x, g, b):
    mu = jnp.mean(x, axis=-1, keepdims=True)
    var = jnp.mean((x - mu) ** 2, axis=-1, keepdims=True)
    return (x - mu) * jax.lax.rsqrt(var + LN_EPS) * g + b


def _mm(a, b):
    return jnp.dot(a, b, preferred_element_type=jnp.float32)


def _proj_tiny(x, w, b):
    # x: (M, k) with tiny k (d_in of the weight-space graph); avoid a K<8 MXU matmul.
    out = x[:, 0:1] * w[0:1, :] + b
    for kk in range(1, x.shape[1]):
        out = out + x[:, kk:kk + 1] * w[kk:kk + 1, :]
    return out


def _proj_tiny3(x, w, b):
    # x: (Np, Np, k) with tiny k; broadcast multiply-accumulate on the VPU.
    out = x[..., 0:1] * w[0:1, :] + b
    for kk in range(1, x.shape[-1]):
        out = out + x[..., kk:kk + 1] * w[kk:kk + 1, :]
    return out


# ----------------------------------- kernels --------------------------------------

def _construct_kernel(node_raw_ref, eraw_ref, erawt_ref, pos_ref, base_ref,
                      w_pb_ref, b_pb_ref, w_pw_ref, b_pw_ref,
                      w_n_ref, b_n_ref, w_e_ref, b_e_ref,
                      node_ref, edge_ref, edget_ref, *, n_real):
    """GraphConstructor: proj_bias/proj_weight -> proj_node_in/proj_edge_in (+pos),
    cls token inserted at row 0, padded rows / cls edge row+col zeroed.
    Produces the edge features in both (i,j) and (j,i) orientations."""
    np_, d = pos_ref.shape
    n2 = np_ * np_

    nb = _proj_tiny(node_raw_ref[...], w_pb_ref[...], b_pb_ref[...])
    nb = _mm(nb, w_n_ref[...]) + b_n_ref[...] + pos_ref[...]
    row = jax.lax.broadcasted_iota(jnp.int32, (np_, d), 0)
    node_ref[...] = base_ref[...] + jnp.where((row >= 1) & (row < n_real), nb, 0.0)

    ii = jax.lax.broadcasted_iota(jnp.int32, (np_, np_, d), 0)
    jj = jax.lax.broadcasted_iota(jnp.int32, (np_, np_, d), 1)
    keep = (ii >= 1) & (ii < n_real) & (jj >= 1) & (jj < n_real)

    def project(raw3):
        ew = _proj_tiny3(raw3, w_pw_ref[...], b_pw_ref[...])            # (Np, Np, D)
        ew = (_mm(ew.reshape(n2, d), w_e_ref[...]) + b_e_ref[...]).reshape(np_, np_, d)
        return jnp.where(keep, ew, 0.0)

    edge_ref[...] = project(eraw_ref[...])
    edget_ref[...] = project(erawt_ref[...])


def _layer_kernel(node0_ref, edge0_ref, edge0t_ref,
                  w_qkv_node_ref, w_qkve_qk_ref, w_qkve_v_ref,
                  w_lin0_ref, b_lin0_ref, nln0_ref, nln1_ref,
                  w_nm1_ref, w_nm2_ref, b_nm2_ref,
                  w_st_ref, b_st_ref, w_ec_ref, w_er_ref,
                  w_e12_ref, b_e_ref, w_el1_ref, b_el1_ref,
                  eln0_ref, eln1_ref, w_em1_ref, w_em2_ref, b_em2_ref,
                  node_ref, e_ref, et_ref, *, n_real, n_heads):
    """One RTLayer (RTAttention + 'rt' node update + EdgeMLP + edge MLP1), iterated over the
    layer grid axis with node / edge / edge^T kept VMEM-resident (outputs/scratch as carry)."""
    l = pl.program_id(1)

    @pl.when(l == 0)
    def _():
        node_ref[...] = node0_ref[...]
        e_ref[...] = edge0_ref[...]
        et_ref[...] = edge0t_ref[...]

    np_, d = node_ref.shape
    n2 = np_ * np_
    dh = d // n_heads
    scale = 1.0 / (d ** 0.5)            # 1/sqrt(d_hid), as in RTAttention
    inv_n = 1.0 / n_real

    node = node_ref[...]                # (Np, D)
    e3 = e_ref[...]                     # (Np, Np, D),   e3[i, j]  = edge[i, j]
    et3 = et_ref[...]                   # (Np, Np, D),   et3[i, j] = edge[j, i]
    e_flat = e3.reshape(n2, d)
    et_flat = et3.reshape(n2, d)

    # One-hot "repeat row i over all j" selector built from iota (no HBM input; avoids
    # relying on major<->sublane relayout broadcasts). Used 3x per layer, K=Np matmul.
    r_idx = jax.lax.broadcasted_iota(jnp.int32, (n2, np_), 0)
    c_idx = jax.lax.broadcasted_iota(jnp.int32, (n2, np_), 1)
    sel_i = jnp.where((r_idx >= c_idx * np_) & (r_idx < (c_idx + 1) * np_), 1.0, 0.0)

    def bcast_i(x):                      # (Np, D) -> (Np, Np, D), out[i, j] = x[i]
        return _mm(sel_i, x).reshape(np_, np_, x.shape[-1])

    # ----------------- RTAttention (modulate_v=True) + 'rt' node update -----------------
    # NOTE: fused qkv weights use chunk-major column order ([q|k|v], heads contiguous inside
    # each chunk); equivalent to the reference up to a fixed column permutation of the weights.
    qkv_n = _mm(node, w_qkv_node_ref[...])                 # (Np, 3D)
    qn = qkv_n[:, :d]
    kn = qkv_n[:, d:2 * d]
    vn = qkv_n[:, 2 * d:]

    qk_e = _mm(e_flat, w_qkve_qk_ref[...])                 # (n2, 2D) = [q_edge | k_edge]
    q = bcast_i(qn) + qk_e[:, :d].reshape(np_, np_, d)
    k = kn[None, :, :] + qk_e[:, d:].reshape(np_, np_, d)
    qk = q * k                                             # (Np, Np, D)

    # per-head channel reduction via an iota-built (D, H) head selector (K = D matmul)
    dd = jax.lax.broadcasted_iota(jnp.int32, (d, n_heads), 0)
    hh = jax.lax.broadcasted_iota(jnp.int32, (d, n_heads), 1)
    hm = jnp.where((dd >= hh * dh) & (dd < (hh + 1) * dh), 1.0, 0.0)
    dots = (_mm(qk.reshape(n2, d), hm) * scale).reshape(np_, np_, n_heads)

    jj_h = jax.lax.broadcasted_iota(jnp.int32, (np_, np_, n_heads), 1)
    valid = jj_h < n_real
    dots = jnp.where(valid, dots, NEG_INF)
    m = jnp.max(dots, axis=1, keepdims=True)               # (Np, 1, H) max-centred softmax
    ex = jnp.where(valid, jnp.exp(dots - m), 0.0)
    den = jnp.sum(ex, axis=1, keepdims=True)
    attn = ex * pl.reciprocal(den, approx=True)            # (Np, Np, H)

    v_e = _mm(e_flat, w_qkve_v_ref[...])                   # (n2, 2D) = [v_add | v_gate]
    v = (vn[None, :, :] * v_e[:, d:].reshape(np_, np_, d)
         + v_e[:, :d].reshape(np_, np_, d))                # modulate_v=True

    lane = jax.lax.broadcasted_iota(jnp.int32, (np_, np_, d), 2)
    attn_full = None
    for h in range(n_heads):
        head_mask = (lane >= h * dh) & (lane < (h + 1) * dh)
        term = jnp.where(head_mask, attn[..., h:h + 1], 0.0)
        attn_full = term if attn_full is None else attn_full + term
    attn_out = jnp.sum(attn_full * v, axis=1)              # (Np, D): sum over j

    # node = LN0(node + lin0(attn)); node = LN1(node + node_mlp(node))   (dropout p=0)
    ln0 = nln0_ref[...]
    ln1 = nln1_ref[...]
    y = _mm(attn_out, w_lin0_ref[...]) + b_lin0_ref[...]
    x = _layer_norm(node + y, ln0[0:1], ln0[1:2])
    mlp = _mm(_gelu(_mm(x, w_nm1_ref[...])), w_nm2_ref[...]) + b_nm2_ref[...]
    row = jax.lax.broadcasted_iota(jnp.int32, (np_, d), 0)
    node_new = jnp.where(row < n_real,
                         _layer_norm(x + mlp, ln1[0:1], ln1[1:2]), 0.0)
    node_ref[...] = node_new

    # ------------- EdgeMLP + eln0 + edge_mlp1 + eln1 (both orientations updated) -------------
    st = _mm(node_new, w_st_ref[...]) + b_st_ref[...]      # (Np, 2D) = [lin0_s | lin0_t]
    s = st[:, :d]
    t = st[:, d:]
    mean_i = jnp.sum(e3, axis=0) * inv_n                   # edge.mean over i (j-indexed)
    mean_j = jnp.sum(et3, axis=0) * inv_n                  # edge.mean over j (i-indexed)
    src_e = _mm(mean_i, w_ec_ref[...])                     # lin0_ec, j-indexed
    tgt_e = _mm(mean_j, w_er_ref[...])                     # lin0_er, i-indexed

    a12 = _mm(e_flat, w_e12_ref[...])                      # [E @we1  | E @we2 ]
    b12 = _mm(et_flat, w_e12_ref[...])                     # [ET@we1  | ET@we2 ]
    be = b_e_ref[...]
    i_term = s + tgt_e                                     # i-indexed
    j_term = t + src_e                                     # j-indexed

    e0 = ((a12[:, :d] + b12[:, d:]).reshape(np_, np_, d)
          + be + bcast_i(i_term) + j_term[None, :, :])
    e0t = ((b12[:, :d] + a12[:, d:]).reshape(np_, np_, d)
           + be + bcast_i(j_term) + i_term[None, :, :])

    el0 = eln0_ref[...]
    el1 = eln1_ref[...]
    ii_d = jax.lax.broadcasted_iota(jnp.int32, (np_, np_, d), 0)
    jj_d = jax.lax.broadcasted_iota(jnp.int32, (np_, np_, d), 1)
    emask = (ii_d < n_real) & (jj_d < n_real)

    def edge_tail(e_in3, e0_3):
        mlp0 = (_mm(_gelu(e0_3).reshape(n2, d), w_el1_ref[...])
                + b_el1_ref[...]).reshape(np_, np_, d)
        xe = _layer_norm(e_in3 + mlp0, el0[0:1], el0[1:2])                    # eln0
        m1 = (_mm(_gelu(_mm(xe.reshape(n2, d), w_em1_ref[...])), w_em2_ref[...])
              + b_em2_ref[...]).reshape(np_, np_, d)
        return jnp.where(emask, _layer_norm(xe + m1, el1[0:1], el1[1:2]), 0.0)  # eln1

    e_ref[...] = edge_tail(e3, e0)
    et_ref[...] = edge_tail(et3, e0t)


def _readout_kernel(node_ref, w1_ref, b1_ref, w2_ref, b2_ref, w3_ref, b3_ref, out_ref,
                    *, n_real):
    """graph_features='mean' + proj_out (Linear/ReLU/Linear/ReLU/Linear), batched over B."""
    g = jnp.sum(node_ref[...], axis=1) * (1.0 / n_real)    # padded rows are exactly zero
    x = jnp.maximum(_mm(g, w1_ref[...]) + b1_ref[...], 0.0)
    x = jnp.maximum(_mm(x, w2_ref[...]) + b2_ref[...], 0.0)
    out_ref[...] = _mm(x, w3_ref[...]) + b3_ref[...]


# ------------------------------- pallas_call wrappers ------------------------------

def _b1(shape):
    nd = len(shape)
    return pl.BlockSpec((None,) + tuple(shape), lambda b, _n=nd: (b,) + (0,) * _n)


def _s1(shape):
    nd = len(shape)
    return pl.BlockSpec(tuple(shape), lambda b, _n=nd: (0,) * _n)


def _b2(shape):
    nd = len(shape)
    return pl.BlockSpec((None,) + tuple(shape), lambda b, l, _n=nd: (b,) + (0,) * _n)


def _l2(shape):
    nd = len(shape)
    return pl.BlockSpec((None,) + tuple(shape), lambda b, l, _n=nd: (l,) + (0,) * _n)


def construct_graph(node_raw, edge_raw, edge_rawt, pos_full, node_base, p, n_real):
    bsz, n_pad, _ = node_raw.shape
    d_hid = pos_full.shape[-1]
    args = (node_raw, edge_raw, edge_rawt, pos_full, node_base,
            p["proj_bias_w"], p["proj_bias_b"], p["proj_weight_w"], p["proj_weight_b"],
            p["proj_node_in_w"], p["proj_node_in_b"], p["proj_edge_in_w"], p["proj_edge_in_b"])
    in_specs = [_b1(node_raw.shape[1:]), _b1(edge_raw.shape[1:]), _b1(edge_rawt.shape[1:])]
    in_specs += [_s1(a.shape) for a in args[3:]]
    out_shape = (jax.ShapeDtypeStruct((bsz, n_pad, d_hid), jnp.float32),
                 jax.ShapeDtypeStruct((bsz, n_pad, n_pad, d_hid), jnp.float32),
                 jax.ShapeDtypeStruct((bsz, n_pad, n_pad, d_hid), jnp.float32))
    out_specs = (_b1((n_pad, d_hid)), _b1((n_pad, n_pad, d_hid)), _b1((n_pad, n_pad, d_hid)))
    kernel = functools.partial(_construct_kernel, n_real=n_real)
    return pl.pallas_call(
        kernel, out_shape=out_shape, grid=(bsz,), in_specs=in_specs, out_specs=out_specs,
        compiler_params=pltpu.CompilerParams(dimension_semantics=("parallel",)),
    )(*args)


_LAYER_WEIGHT_ORDER = [
    "w_qkv_node", "w_qkve_qk", "w_qkve_v", "w_lin0", "b_lin0", "nln0", "nln1",
    "w_nm1", "w_nm2", "b_nm2",
    "w_st", "b_st", "w_ec", "w_er", "w_e12", "b_e", "w_el1", "b_el1",
    "eln0", "eln1", "w_em1", "w_em2", "b_em2",
]


def run_layers(node0, edge0, edge0t, stk, n_real, n_heads):
    bsz, n_pad, d = node0.shape
    n_layers = stk["w_qkv_node"].shape[0]
    w_args = [stk[k] for k in _LAYER_WEIGHT_ORDER]
    in_specs = ([_b2(node0.shape[1:]), _b2(edge0.shape[1:]), _b2(edge0t.shape[1:])]
                + [_l2(a.shape[1:]) for a in w_args])
    kernel = functools.partial(_layer_kernel, n_real=n_real, n_heads=n_heads)
    return pl.pallas_call(
        kernel,
        out_shape=jax.ShapeDtypeStruct((bsz, n_pad, d), jnp.float32),
        grid=(bsz, n_layers),
        in_specs=in_specs,
        out_specs=_b2((n_pad, d)),
        scratch_shapes=[pltpu.VMEM((n_pad, n_pad, d), jnp.float32),   # edge carry (i,j)
                        pltpu.VMEM((n_pad, n_pad, d), jnp.float32)],  # edge carry (j,i)
        compiler_params=pltpu.CompilerParams(
            dimension_semantics=("parallel", "arbitrary")),
    )(node0, edge0, edge0t, *w_args)


def readout(node, p, n_real):
    bsz = node.shape[0]
    d_out = p["out_w3"].shape[1]
    kernel = functools.partial(_readout_kernel, n_real=n_real)
    return pl.pallas_call(
        kernel, out_shape=jax.ShapeDtypeStruct((bsz, d_out), jnp.float32),
    )(node, p["out_w1"], p["out_b1"], p["out_w2"], p["out_b2"], p["out_w3"], p["out_b3"])


# ------------------------------------- glue ---------------------------------------

def _round_up(x, m):
    return ((x + m - 1) // m) * m


def _pack_layers(layers, d_hid):
    def stack(key):
        return jnp.stack([lp[key] for lp in layers], axis=0)

    def stack_cat(k1, k2, axis):
        return jnp.stack([jnp.concatenate([lp[k1], lp[k2]], axis=axis) for lp in layers], 0)

    return {
        "w_qkv_node": stack("w_qkv_node"),
        "w_qkve_qk": jnp.stack([lp["w_qkv_edge"][:, :2 * d_hid] for lp in layers], 0),
        "w_qkve_v": jnp.stack([lp["w_qkv_edge"][:, 2 * d_hid:] for lp in layers], 0),
        "w_lin0": stack("lin0_w"), "b_lin0": stack("lin0_b"),
        "nln0": stack_cat("nln0_g", "nln0_b", 0),
        "nln1": stack_cat("nln1_g", "nln1_b", 0),
        "w_nm1": stack("nmlp_w1"), "w_nm2": stack("nmlp_w2"), "b_nm2": stack("nmlp_b2"),
        "w_st": stack_cat("e_s_w", "e_t_w", 1), "b_st": stack_cat("e_s_b", "e_t_b", 1),
        "w_ec": stack("e_ec_w"), "w_er": stack("e_er_w"),
        "w_e12": stack_cat("e_e1_w", "e_e2_w", 1), "b_e": stack("e_e_b"),
        "w_el1": stack("e_lin1_w"), "b_el1": stack("e_lin1_b"),
        "eln0": stack_cat("eln0_g", "eln0_b", 0), "eln1": stack_cat("eln1_g", "eln1_b", 0),
        "w_em1": stack("emlp_w1"), "w_em2": stack("emlp_w2"), "b_em2": stack("emlp_b2"),
    }


def rt_transformer_forward(params, weights, biases, layer_layout, n_heads):
    d_hid = params["cls_token"].shape[0]
    bsz = weights[0].shape[0]
    d_w = weights[0].shape[-1]
    d_b = biases[0].shape[-1]
    n_graph = sum(w.shape[1] for w in weights) + weights[-1].shape[2]
    n_real = n_graph + 1                        # + cls token at index 0
    n_pad = max(8, _round_up(n_real, 8))        # sublane alignment; padded slots stay zero

    # ---- raw graph tensors (batch_to_graphs) placed at offset 1 (cls slot = row 0) ----
    node_raw = jnp.zeros((bsz, n_pad, d_b), jnp.float32)
    edge_raw = jnp.zeros((bsz, n_pad, n_pad, d_w), jnp.float32)
    row, col = 1, 1 + weights[0].shape[1]
    for w in weights:                           # normalize=False => mean 0 / std 1
        _, n_in, n_out, _ = w.shape
        edge_raw = edge_raw.at[:, row:row + n_in, col:col + n_out].set(w)
        row += n_in
        col += n_out
    row = 1 + weights[0].shape[1]
    for b in biases:
        _, n_out, _ = b.shape
        node_raw = node_raw.at[:, row:row + n_out].set(b)
        row += n_out
    # One-time tiny (d_w-channel) reversal outside Pallas; the per-layer D-channel reversal is
    # handled by the dual-orientation edge carry inside the layer kernel.
    edge_rawt = jnp.swapaxes(edge_raw, 1, 2)

    pos_layout = [1] * layer_layout[0] + list(layer_layout[1:-1]) + [1] * layer_layout[-1]
    pos_graph = jnp.concatenate(
        [jnp.broadcast_to(params["pos_embed"][i][None, :], (nrep, d_hid))
         for i, nrep in enumerate(pos_layout)], axis=0)              # (n_graph, d_hid)
    pos_full = jnp.zeros((n_pad, d_hid), jnp.float32).at[1:1 + n_graph].set(pos_graph)
    node_base = jnp.zeros((n_pad, d_hid), jnp.float32).at[0].set(params["cls_token"])

    node0, edge0, edge0t = construct_graph(node_raw, edge_raw, edge_rawt,
                                           pos_full, node_base, params, n_real)
    stk = _pack_layers(params["layers"], d_hid)
    node_final = run_layers(node0, edge0, edge0t, stk, n_real, n_heads)
    return readout(node_final, params, n_real)


def init_params(d_in, d_hid, d_out, n_layers, n_heads, layer_layout, seed=0):
    root = jax.random.PRNGKey(seed)
    counter = [0]

    def rnd(shape, scale):
        counter[0] += 1
        k = jax.random.fold_in(root, counter[0])
        return (scale * jax.random.normal(k, shape)).astype(jnp.float32)

    def linear(din, dout, bias=True):
        w = rnd((din, dout), 1.0 / (din ** 0.5))
        b = jnp.zeros((1, dout), jnp.float32) if bias else None
        return w, b

    ones = lambda: jnp.ones((1, d_hid), jnp.float32)
    zeros = lambda: jnp.zeros((1, d_hid), jnp.float32)

    p = {}
    pos_layout = [1] * layer_layout[0] + list(layer_layout[1:-1]) + [1] * layer_layout[-1]
    p["pos_embed"] = rnd((len(pos_layout), d_hid), 1.0)
    p["cls_token"] = rnd((d_hid,), 1.0)
    p["proj_bias_w"], p["proj_bias_b"] = linear(d_in, d_hid)
    p["proj_weight_w"], p["proj_weight_b"] = linear(d_in, d_hid)
    p["proj_node_in_w"], p["proj_node_in_b"] = linear(d_hid, d_hid)
    p["proj_edge_in_w"], p["proj_edge_in_b"] = linear(d_hid, d_hid)
    layers = []
    for _ in range(n_layers):
        lp = {}
        lp["w_qkv_node"], _ = linear(d_hid, 3 * d_hid, bias=False)
        lp["w_qkv_edge"], _ = linear(d_hid, 4 * d_hid, bias=False)   # modulate_v=True -> 4 chunks
        lp["lin0_w"], lp["lin0_b"] = linear(d_hid, d_hid)
        lp["nln0_g"], lp["nln0_b"] = ones(), zeros()
        lp["nln1_g"], lp["nln1_b"] = ones(), zeros()
        lp["nmlp_w1"], _ = linear(d_hid, 2 * d_hid, bias=False)
        lp["nmlp_w2"], lp["nmlp_b2"] = linear(2 * d_hid, d_hid)
        lp["e_s_w"], lp["e_s_b"] = linear(d_hid, d_hid)
        lp["e_t_w"], lp["e_t_b"] = linear(d_hid, d_hid)
        lp["e_ec_w"], _ = linear(d_hid, d_hid, bias=False)
        lp["e_er_w"], _ = linear(d_hid, d_hid, bias=False)
        lp["e_e1_w"], _ = linear(d_hid, d_hid, bias=False)   # lin0_e half applied to edge[i,j]
        lp["e_e2_w"], lp["e_e_b"] = linear(d_hid, d_hid)      # lin0_e half applied to edge[j,i] (+bias)
        lp["e_lin1_w"], lp["e_lin1_b"] = linear(d_hid, d_hid)
        lp["eln0_g"], lp["eln0_b"] = ones(), zeros()
        lp["emlp_w1"], _ = linear(d_hid, 2 * d_hid, bias=False)
        lp["emlp_w2"], lp["emlp_b2"] = linear(2 * d_hid, d_hid)
        lp["eln1_g"], lp["eln1_b"] = ones(), zeros()
        layers.append(lp)
    p["layers"] = layers
    p["out_w1"], p["out_b1"] = linear(d_hid, d_hid)
    p["out_w2"], p["out_b2"] = linear(d_hid, d_hid)
    p["out_w3"], p["out_b3"] = linear(d_hid, d_out)
    return p


if __name__ == "__main__":
    # Small shapes consistent with the module: an MLP with layer_layout [2, 4, 3], so
    # inputs = (weights, biases) with weights[k]: (B, n_k, n_{k+1}, 1), biases[k]: (B, n_{k+1}, 1).
    layer_layout = [2, 4, 3]
    d_in, d_hid, d_out = 1, 32, 8
    n_layers, n_heads, B = 2, 4, 2

    key = jax.random.PRNGKey(0)
    k0, k1, k2, k3 = jax.random.split(key, 4)
    w0 = jax.random.normal(k0, (B, layer_layout[0], layer_layout[1], d_in), jnp.float32)
    w1 = jax.random.normal(k1, (B, layer_layout[1], layer_layout[2], d_in), jnp.float32)
    b0 = jax.random.normal(k2, (B, layer_layout[1], d_in), jnp.float32)
    b1 = jax.random.normal(k3, (B, layer_layout[2], d_in), jnp.float32)

    params = init_params(d_in, d_hid, d_out, n_layers, n_heads, layer_layout, seed=42)
    out = rt_transformer_forward(params, [w0, w1], [b0, b1], layer_layout, n_heads)
    jax.block_until_ready(out)
    assert out.shape == (B, d_out) and out.dtype == jnp.float32
    print("KERNEL_OK")
</pallas_src>

<mosaic_0001>
module attributes {stable_mosaic.version = 11 : i64} {
  func.func @_construct_kernel(%arg0: i32, %arg1: memref<1x16x1xf32, #tpu.memory_space<vmem>>, %arg2: memref<1x16x16x1xf32, #tpu.memory_space<vmem>>, %arg3: memref<1x16x16x1xf32, #tpu.memory_space<vmem>>, %arg4: memref<16x32xf32, #tpu.memory_space<vmem>>, %arg5: memref<16x32xf32, #tpu.memory_space<vmem>>, %arg6: memref<1x32xf32, #tpu.memory_space<vmem>>, %arg7: memref<1x32xf32, #tpu.memory_space<vmem>>, %arg8: memref<1x32xf32, #tpu.memory_space<vmem>>, %arg9: memref<1x32xf32, #tpu.memory_space<vmem>>, %arg10: memref<32x32xf32, #tpu.memory_space<vmem>>, %arg11: memref<1x32xf32, #tpu.memory_space<vmem>>, %arg12: memref<32x32xf32, #tpu.memory_space<vmem>>, %arg13: memref<1x32xf32, #tpu.memory_space<vmem>>, %arg14: memref<1x16x32xf32, #tpu.memory_space<vmem>>, %arg15: memref<1x16x16x32xf32, #tpu.memory_space<vmem>>, %arg16: memref<1x16x16x32xf32, #tpu.memory_space<vmem>>) attributes {dimension_semantics = [#tpu.dimension_semantics<parallel>], iteration_bounds = array<i64: 2>, scalar_prefetch = 0 : i64, scratch_operands = 0 : i64, tpu.core_type = #tpu.core_type<tc>, window_params = [{transform_indices = @transform_0, window_bounds = array<i64: 1, 16, 1>}, {transform_indices = @transform_1, window_bounds = array<i64: 1, 16, 16, 1>}, {transform_indices = @transform_2, window_bounds = array<i64: 1, 16, 16, 1>}, {pipeline_mode = #tpu.pipeline_mode<synchronous>, transform_indices = @transform_3, window_bounds = array<i64: 16, 32>}, {pipeline_mode = #tpu.pipeline_mode<synchronous>, transform_indices = @transform_4, window_bounds = array<i64: 16, 32>}, {pipeline_mode = #tpu.pipeline_mode<synchronous>, transform_indices = @transform_5, window_bounds = array<i64: 1, 32>}, {pipeline_mode = #tpu.pipeline_mode<synchronous>, transform_indices = @transform_6, window_bounds = array<i64: 1, 32>}, {pipeline_mode = #tpu.pipeline_mode<synchronous>, transform_indices = @transform_7, window_bounds = array<i64: 1, 32>}, {pipeline_mode = #tpu.pipeline_mode<synchronous>, transform_indices = @transform_8, window_bounds = array<i64: 1, 32>}, {pipeline_mode = #tpu.pipeline_mode<synchronous>, transform_indices = @transform_9, window_bounds = array<i64: 32, 32>}, {pipeline_mode = #tpu.pipeline_mode<synchronous>, transform_indices = @transform_10, window_bounds = array<i64: 1, 32>}, {pipeline_mode = #tpu.pipeline_mode<synchronous>, transform_indices = @transform_11, window_bounds = array<i64: 32, 32>}, {pipeline_mode = #tpu.pipeline_mode<synchronous>, transform_indices = @transform_12, window_bounds = array<i64: 1, 32>}, {transform_indices = @transform_13, window_bounds = array<i64: 1, 16, 32>}, {transform_indices = @transform_14, window_bounds = array<i64: 1, 16, 16, 32>}, {transform_indices = @transform_15, window_bounds = array<i64: 1, 16, 16, 32>}]} {
    %c0 = arith.constant 0 : index
    %c0_0 = arith.constant 0 : index
    %c0_1 = arith.constant 0 : index
    %0 = vector.load %arg1[%c0, %c0_0, %c0_1] : memref<1x16x1xf32, #tpu.memory_space<vmem>>, vector<1x16x1xf32>
    %1 = vector.shape_cast %0 : vector<1x16x1xf32> to vector<16x1xf32>
    %c0_2 = arith.constant 0 : index
    %c0_3 = arith.constant 0 : index
    %2 = vector.load %arg6[%c0_2, %c0_3] : memref<1x32xf32, #tpu.memory_space<vmem>>, vector<1x32xf32>
    %c0_4 = arith.constant 0 : index
    %c0_5 = arith.constant 0 : index
    %3 = vector.load %arg7[%c0_4, %c0_5] : memref<1x32xf32, #tpu.memory_space<vmem>>, vector<1x32xf32>
    %4 = vector.broadcast %1 : vector<16x1xf32> to vector<16x32xf32>
    %5 = vector.broadcast %2 : vector<1x32xf32> to vector<16x32xf32>
    %6 = arith.mulf %4, %5 : vector<16x32xf32>
    %7 = vector.broadcast %3 : vector<1x32xf32> to vector<16x32xf32>
    %8 = arith.addf %6, %7 : vector<16x32xf32>
    %c0_6 = arith.constant 0 : index
    %c0_7 = arith.constant 0 : index
    %9 = vector.load %arg10[%c0_6, %c0_7] : memref<32x32xf32, #tpu.memory_space<vmem>>, vector<32x32xf32>
    %cst = arith.constant dense<0.000000e+00> : vector<16x32xf32>
    %10 = tpu.matmul %8, %9, %cst {dimension_numbers = #tpu.dot_dimension_numbers<[1], [0], [0], [1], [0, 0, 1, 1], [], []>} : vector<16x32xf32>, vector<32x32xf32>, vector<16x32xf32> -> vector<16x32xf32>
    %c0_8 = arith.constant 0 : index
    %c0_9 = arith.constant 0 : index
    %11 = vector.load %arg11[%c0_8, %c0_9] : memref<1x32xf32, #tpu.memory_space<vmem>>, vector<1x32xf32>
    %12 = vector.broadcast %11 : vector<1x32xf32> to vector<16x32xf32>
    %13 = arith.addf %10, %12 : vector<16x32xf32>
    %c0_10 = arith.constant 0 : index
    %c0_11 = arith.constant 0 : index
    %14 = vector.load %arg4[%c0_10, %c0_11] : memref<16x32xf32, #tpu.memory_space<vmem>>, vector<16x32xf32>
    %15 = arith.addf %13, %14 : vector<16x32xf32>
    %16 = tpu.iota {dimensions = array<i32: 0>} : vector<16x32xi32>
    %c0_12 = arith.constant 0 : index
    %c0_13 = arith.constant 0 : index
    %17 = vector.load %arg5[%c0_12, %c0_13] : memref<16x32xf32, #tpu.memory_space<vmem>>, vector<16x32xf32>
    %c1_i32 = arith.constant 1 : i32
    %18 = vector.broadcast %c1_i32 : i32 to vector<16x32xi32>
    %19 = arith.cmpi sge, %16, %18 : vector<16x32xi32>
    %c10_i32 = arith.constant 10 : i32
    %20 = vector.broadcast %c10_i32 : i32 to vector<16x32xi32>
    %21 = arith.cmpi slt, %16, %20 : vector<16x32xi32>
    %22 = arith.andi %19, %21 : vector<16x32xi1>
    %cst_14 = arith.constant 0.000000e+00 : f32
    %23 = vector.broadcast %cst_14 : f32 to vector<16x32xf32>
    %24 = arith.select %22, %15, %23 : vector<16x32xi1>, vector<16x32xf32>
    %25 = arith.addf %17, %24 : vector<16x32xf32>
    %c0_15 = arith.constant 0 : index
    %c0_16 = arith.constant 0 : index
    %c0_17 = arith.constant 0 : index
    %26 = vector.load %arg14[%c0_15, %c0_16, %c0_17] : memref<1x16x32xf32, #tpu.memory_space<vmem>>, vector<1x16x32xf32>
    %27 = vector.shape_cast %26 : vector<1x16x32xf32> to vector<16x32xf32>
    %28 = vector.shape_cast %25 : vector<16x32xf32> to vector<1x16x32xf32>
    tpu.vector_store %arg14[%c0_15, %c0_16, %c0_17], %28 {strides = array<i32>} : memref<1x16x32xf32, #tpu.memory_space<vmem>>, vector<1x16x32xf32>,
    %29 = tpu.iota {dimensions = array<i32: 0>} : vector<16x16x32xi32>
    %30 = tpu.iota {dimensions = array<i32: 1>} : vector<16x16x32xi32>
    %c1_i32_18 = arith.constant 1 : i32
    %31 = vector.broadcast %c1_i32_18 : i32 to vector<16x16x32xi32>
    %32 = arith.cmpi sge, %29, %31 : vector<16x16x32xi32>
    %c10_i32_19 = arith.constant 10 : i32
    %33 = vector.broadcast %c10_i32_19 : i32 to vector<16x16x32xi32>
    %34 = arith.cmpi slt, %29, %33 : vector<16x16x32xi32>
    %35 = arith.andi %32, %34 : vector<16x16x32xi1>
    %c1_i32_20 = arith.constant 1 : i32
    %36 = vector.broadcast %c1_i32_20 : i32 to vector<16x16x32xi32>
    %37 = arith.cmpi sge, %30, %36 : vector<16x16x32xi32>
    %38 = arith.andi %35, %37 : vector<16x16x32xi1>
    %c10_i32_21 = arith.constant 10 : i32
    %39 = vector.broadcast %c10_i32_21 : i32 to vector<16x16x32xi32>
    %40 = arith.cmpi slt, %30, %39 : vector<16x16x32xi32>
    %41 = arith.andi %38, %40 : vector<16x16x32xi1>
    %c0_22 = arith.constant 0 : index
    %c0_23 = arith.constant 0 : index
    %c0_24 = arith.constant 0 : index
    %c0_25 = arith.constant 0 : index
    %42 = vector.load %arg2[%c0_22, %c0_23, %c0_24, %c0_25] : memref<1x16x16x1xf32, #tpu.memory_space<vmem>>, vector<1x16x16x1xf32>
    %43 = vector.shape_cast %42 : vector<1x16x16x1xf32> to vector<16x16x1xf32>
    %c0_26 = arith.constant 0 : index
    %c0_27 = arith.constant 0 : index
    %44 = vector.load %arg8[%c0_26, %c0_27] : memref<1x32xf32, #tpu.memory_space<vmem>>, vector<1x32xf32>
    %c0_28 = arith.constant 0 : index
    %c0_29 = arith.constant 0 : index
    %45 = vector.load %arg9[%c0_28, %c0_29] : memref<1x32xf32, #tpu.memory_space<vmem>>, vector<1x32xf32>
    %46 = vector.shape_cast %44 : vector<1x32xf32> to vector<1x1x32xf32>
    %47 = vector.broadcast %43 : vector<16x16x1xf32> to vector<16x16x32xf32>
    %48 = vector.broadcast %46 : vector<1x1x32xf32> to vector<16x16x32xf32>
    %49 = arith.mulf %47, %48 : vector<16x16x32xf32>
    %50 = vector.shape_cast %45 : vector<1x32xf32> to vector<1x1x32xf32>
    %51 = vector.broadcast %50 : vector<1x1x32xf32> to vector<16x16x32xf32>
    %52 = arith.addf %49, %51 : vector<16x16x32xf32>
    %53 = vector.shape_cast %52 : vector<16x16x32xf32> to vector<256x32xf32>
    %c0_30 = arith.constant 0 : index
    %c0_31 = arith.constant 0 : index
    %54 = vector.load %arg12[%c0_30, %c0_31] : memref<32x32xf32, #tpu.memory_space<vmem>>, vector<32x32xf32>
    %cst_32 = arith.constant dense<0.000000e+00> : vector<256x32xf32>
    %55 = tpu.matmul %53, %54, %cst_32 {dimension_numbers = #tpu.dot_dimension_numbers<[1], [0], [0], [1], [0, 0, 1, 1], [], []>} : vector<256x32xf32>, vector<32x32xf32>, vector<256x32xf32> -> vector<256x32xf32>
    %c0_33 = arith.constant 0 : index
    %c0_34 = arith.constant 0 : index
    %56 = vector.load %arg13[%c0_33, %c0_34] : memref<1x32xf32, #tpu.memory_space<vmem>>, vector<1x32xf32>
    %57 = vector.broadcast %56 : vector<1x32xf32> to vector<256x32xf32>
    %58 = arith.addf %55, %57 : vector<256x32xf32>
    %59 = vector.shape_cast %58 : vector<256x32xf32> to vector<16x16x32xf32>
    %cst_35 = arith.constant 0.000000e+00 : f32
    %60 = vector.broadcast %cst_35 : f32 to vector<16x16x32xf32>
    %61 = arith.select %41, %59, %60 : vector<16x16x32xi1>, vector<16x16x32xf32>
    %c0_36 = arith.constant 0 : index
    %c0_37 = arith.constant 0 : index
    %c0_38 = arith.constant 0 : index
    %c0_39 = arith.constant 0 : index
    %62 = vector.load %arg15[%c0_36, %c0_37, %c0_38, %c0_39] : memref<1x16x16x32xf32, #tpu.memory_space<vmem>>, vector<1x16x16x32xf32>
    %63 = vector.shape_cast %62 : vector<1x16x16x32xf32> to vector<16x16x32xf32>
    %64 = vector.shape_cast %61 : vector<16x16x32xf32> to vector<1x16x16x32xf32>
    tpu.vector_store %arg15[%c0_36, %c0_37, %c0_38, %c0_39], %64 {strides = array<i32>} : memref<1x16x16x32xf32, #tpu.memory_space<vmem>>, vector<1x16x16x32xf32>,
    %c0_40 = arith.constant 0 : index
    %c0_41 = arith.constant 0 : index
    %c0_42 = arith.constant 0 : index
    %c0_43 = arith.constant 0 : index
    %65 = vector.load %arg3[%c0_40, %c0_41, %c0_42, %c0_43] : memref<1x16x16x1xf32, #tpu.memory_space<vmem>>, vector<1x16x16x1xf32>
    %66 = vector.shape_cast %65 : vector<1x16x16x1xf32> to vector<16x16x1xf32>
    %c0_44 = arith.constant 0 : index
    %c0_45 = arith.constant 0 : index
    %67 = vector.load %arg8[%c0_44, %c0_45] : memref<1x32xf32, #tpu.memory_space<vmem>>, vector<1x32xf32>
    %c0_46 = arith.constant 0 : index
    %c0_47 = arith.constant 0 : index
    %68 = vector.load %arg9[%c0_46, %c0_47] : memref<1x32xf32, #tpu.memory_space<vmem>>, vector<1x32xf32>
    %69 = vector.shape_cast %67 : vector<1x32xf32> to vector<1x1x32xf32>
    %70 = vector.broadcast %66 : vector<16x16x1xf32> to vector<16x16x32xf32>
    %71 = vector.broadcast %69 : vector<1x1x32xf32> to vector<16x16x32xf32>
    %72 = arith.mulf %70, %71 : vector<16x16x32xf32>
    %73 = vector.shape_cast %68 : vector<1x32xf32> to vector<1x1x32xf32>
    %74 = vector.broadcast %73 : vector<1x1x32xf32> to vector<16x16x32xf32>
    %75 = arith.addf %72, %74 : vector<16x16x32xf32>
    %76 = vector.shape_cast %75 : vector<16x16x32xf32> to vector<256x32xf32>
    %c0_48 = arith.constant 0 : index
    %c0_49 = arith.constant 0 : index
    %77 = vector.load %arg12[%c0_48, %c0_49] : memref<32x32xf32, #tpu.memory_space<vmem>>, vector<32x32xf32>
    %cst_50 = arith.constant dense<0.000000e+00> : vector<256x32xf32>
    %78 = tpu.matmul %76, %77, %cst_50 {dimension_numbers = #tpu.dot_dimension_numbers<[1], [0], [0], [1], [0, 0, 1, 1], [], []>} : vector<256x32xf32>, vector<32x32xf32>, vector<256x32xf32> -> vector<256x32xf32>
    %c0_51 = arith.constant 0 : index
    %c0_52 = arith.constant 0 : index
    %79 = vector.load %arg13[%c0_51, %c0_52] : memref<1x32xf32, #tpu.memory_space<vmem>>, vector<1x32xf32>
    %80 = vector.broadcast %79 : vector<1x32xf32> to vector<256x32xf32>
    %81 = arith.addf %78, %80 : vector<256x32xf32>
    %82 = vector.shape_cast %81 : vector<256x32xf32> to vector<16x16x32xf32>
    %cst_53 = arith.constant 0.000000e+00 : f32
    %83 = vector.broadcast %cst_53 : f32 to vector<16x16x32xf32>
    %84 = arith.select %41, %82, %83 : vector<16x16x32xi1>, vector<16x16x32xf32>
    %c0_54 = arith.constant 0 : index
    %c0_55 = arith.constant 0 : index
    %c0_56 = arith.constant 0 : index
    %c0_57 = arith.constant 0 : index
    %85 = vector.load %arg16[%c0_54, %c0_55, %c0_56, %c0_57] : memref<1x16x16x32xf32, #tpu.memory_space<vmem>>, vector<1x16x16x32xf32>
    %86 = vector.shape_cast %85 : vector<1x16x16x32xf32> to vector<16x16x32xf32>
    %87 = vector.shape_cast %84 : vector<16x16x32xf32> to vector<1x16x16x32xf32>
    tpu.vector_store %arg16[%c0_54, %c0_55, %c0_56, %c0_57], %87 {strides = array<i32>} : memref<1x16x16x32xf32, #tpu.memory_space<vmem>>, vector<1x16x16x32xf32>,
    return
  }
  func.func @transform_0(%arg0: i32) -> (i32, i32, i32) {
    %c0_i32 = arith.constant 0 : i32
    %c0_i32_0 = arith.constant 0 : i32
    %c0_i32_1 = arith.constant 0 : i32
    return %arg0, %c0_i32, %c0_i32_0 : i32, i32, i32
  }
  func.func @transform_1(%arg0: i32) -> (i32, i32, i32, i32) {
    %c0_i32 = arith.constant 0 : i32
    %c0_i32_0 = arith.constant 0 : i32
    %c0_i32_1 = arith.constant 0 : i32
    %c0_i32_2 = arith.constant 0 : i32
    return %arg0, %c0_i32, %c0_i32_0, %c0_i32_1 : i32, i32, i32, i32
  }
  func.func @transform_2(%arg0: i32) -> (i32, i32, i32, i32) {
    %c0_i32 = arith.constant 0 : i32
    %c0_i32_0 = arith.constant 0 : i32
    %c0_i32_1 = arith.constant 0 : i32
    %c0_i32_2 = arith.constant 0 : i32
    return %arg0, %c0_i32, %c0_i32_0, %c0_i32_1 : i32, i32, i32, i32
  }
  func.func @transform_3(%arg0: i32) -> (i32, i32) {
    %c0_i32 = arith.constant 0 : i32
    %c0_i32_0 = arith.constant 0 : i32
    %c0_i32_1 = arith.constant 0 : i32
    return %c0_i32, %c0_i32_0 : i32, i32
  }
  func.func @transform_4(%arg0: i32) -> (i32, i32) {
    %c0_i32 = arith.constant 0 : i32
    %c0_i32_0 = arith.constant 0 : i32
    %c0_i32_1 = arith.constant 0 : i32
    return %c0_i32, %c0_i32_0 : i32, i32
  }
  func.func @transform_5(%arg0: i32) -> (i32, i32) {
    %c0_i32 = arith.constant 0 : i32
    %c0_i32_0 = arith.constant 0 : i32
    %c0_i32_1 = arith.constant 0 : i32
    return %c0_i32, %c0_i32_0 : i32, i32
  }
  func.func @transform_6(%arg0: i32) -> (i32, i32) {
    %c0_i32 = arith.constant 0 : i32
    %c0_i32_0 = arith.constant 0 : i32
    %c0_i32_1 = arith.constant 0 : i32
    return %c0_i32, %c0_i32_0 : i32, i32
  }
  func.func @transform_7(%arg0: i32) -> (i32, i32) {
    %c0_i32 = arith.constant 0 : i32
    %c0_i32_0 = arith.constant 0 : i32
    %c0_i32_1 = arith.constant 0 : i32
    return %c0_i32, %c0_i32_0 : i32, i32
  }
  func.func @transform_8(%arg0: i32) -> (i32, i32) {
    %c0_i32 = arith.constant 0 : i32
    %c0_i32_0 = arith.constant 0 : i32
    %c0_i32_1 = arith.constant 0 : i32
    return %c0_i32, %c0_i32_0 : i32, i32
  }
  func.func @transform_9(%arg0: i32) -> (i32, i32) {
    %c0_i32 = arith.constant 0 : i32
    %c0_i32_0 = arith.constant 0 : i32
    %c0_i32_1 = arith.constant 0 : i32
    return %c0_i32, %c0_i32_0 : i32, i32
  }
  func.func @transform_10(%arg0: i32) -> (i32, i32) {
    %c0_i32 = arith.constant 0 : i32
    %c0_i32_0 = arith.constant 0 : i32
    %c0_i32_1 = arith.constant 0 : i32
    return %c0_i32, %c0_i32_0 : i32, i32
  }
  func.func @transform_11(%arg0: i32) -> (i32, i32) {
    %c0_i32 = arith.constant 0 : i32
    %c0_i32_0 = arith.constant 0 : i32
    %c0_i32_1 = arith.constant 0 : i32
    return %c0_i32, %c0_i32_0 : i32, i32
  }
  func.func @transform_12(%arg0: i32) -> (i32, i32) {
    %c0_i32 = arith.constant 0 : i32
    %c0_i32_0 = arith.constant 0 : i32
    %c0_i32_1 = arith.constant 0 : i32
    return %c0_i32, %c0_i32_0 : i32, i32
  }
  func.func @transform_13(%arg0: i32) -> (i32, i32, i32) {
    %c0_i32 = arith.constant 0 : i32
    %c0_i32_0 = arith.constant 0 : i32
    %c0_i32_1 = arith.constant 0 : i32
    return %arg0, %c0_i32, %c0_i32_0 : i32, i32, i32
  }
  func.func @transform_14(%arg0: i32) -> (i32, i32, i32, i32) {
    %c0_i32 = arith.constant 0 : i32
    %c0_i32_0 = arith.constant 0 : i32
    %c0_i32_1 = arith.constant 0 : i32
    %c0_i32_2 = arith.constant 0 : i32
    return %arg0, %c0_i32, %c0_i32_0, %c0_i32_1 : i32, i32, i32, i32
  }
  func.func @transform_15(%arg0: i32) -> (i32, i32, i32, i32) {
    %c0_i32 = arith.constant 0 : i32
    %c0_i32_0 = arith.constant 0 : i32
    %c0_i32_1 = arith.constant 0 : i32
    %c0_i32_2 = arith.constant 0 : i32
    return %arg0, %c0_i32, %c0_i32_0, %c0_i32_1 : i32, i32, i32, i32
  }
}

</mosaic_0001>

<llo_original>
// kernel: tpu_custom_call.1
$region0: #{tpu_custom_call.1}
  #allocation0 [shape = 'u32[]', space=smem, size = 0x4, offset = 0x4, fixed_abs, tag = 'smem constant byte address 0x4 - core index']
  #allocation1 [shape = 'u32[144,128]{1,0:T(1,128)}', space=vmem, size = 0x12000, scoped, tag = 'internal scratch']
  %s0 = inlined_call_operand.vmem [shape: f32[2,16,1], index: 0, kind: input, shape index: {}]
  %s1 = inlined_call_operand.vmem [shape: f32[2,16,16,1], index: 1, kind: input, shape index: {}]
  %s2 = inlined_call_operand.vmem [shape: f32[2,16,16,1], index: 2, kind: input, shape index: {}]
  %s3 = inlined_call_operand.vmem [shape: f32[16,32], index: 3, kind: input, shape index: {}]
  %s4 = inlined_call_operand.vmem [shape: f32[16,32], index: 4, kind: input, shape index: {}]
  %s5 = inlined_call_operand.vmem [shape: f32[1,32], index: 5, kind: input, shape index: {}]
  %s6 = inlined_call_operand.vmem [shape: f32[1,32], index: 6, kind: input, shape index: {}]
  %s7 = inlined_call_operand.vmem [shape: f32[1,32], index: 7, kind: input, shape index: {}]
  %s8 = inlined_call_operand.vmem [shape: f32[1,32], index: 8, kind: input, shape index: {}]
  %s9 = inlined_call_operand.vmem [shape: f32[32,32], index: 9, kind: input, shape index: {}]
  %s10 = inlined_call_operand.vmem [shape: f32[1,32], index: 10, kind: input, shape index: {}]
  %s11 = inlined_call_operand.vmem [shape: f32[32,32], index: 11, kind: input, shape index: {}]
  %s12 = inlined_call_operand.vmem [shape: f32[1,32], index: 12, kind: input, shape index: {}]
  %s13 = inlined_call_operand.hbm [shape: f32[2,16,32], index: 13, kind: output, shape index: {0}]
  %s14 = inlined_call_operand.hbm [shape: f32[2,16,16,32], index: 14, kind: output, shape index: {1}]
  %s15 = inlined_call_operand.hbm [shape: f32[2,16,16,32], index: 15, kind: output, shape index: {2}]
  %16 = xla_tuple %s13, %s14, %s15
  %s17 = sld [smem:[#allocation0]]
  $region101: #{tpu_custom_call.1} parent=0
    _
  %s19 = ssub.s32 1, %s17
  %s20 = scalar_select 0, %s19, %s17
  $region1: #{tpu_custom_call.1} parent=0
    #allocation2 [shape = 'u8[16384]{0}', space=vmem, size = 0x4000, scoped, tag = 'output window, operand 0']
    #allocation3 [shape = 's32[2]{0}', space=sflag, size = 0x8, scoped, tag = 'scoped memory for tpu_custom_call.1']
    #allocation4 [shape = 'u8[262144]{0}', space=vmem, size = 0x40000, scoped, tag = 'output window, operand 1']
    #allocation5 [shape = 's32[2]{0}', space=sflag, size = 0x8, scoped, tag = 'scoped memory for tpu_custom_call.1']
    #allocation6 [shape = 'u8[262144]{0}', space=vmem, size = 0x40000, scoped, tag = 'output window, operand 2']
    %21 = vsyncpa [#allocation3], 0
    %s22 = scalar_lea.sflag [#allocation3], 1
    %23 = vsyncpa %s22, 0
    %24 = vsyncpa [#allocation5], 0
    %s25 = scalar_lea.sflag [#allocation5], 1
    %26 = vsyncpa %s25, 0
    loop: start=0, step=1, limit=4
    $region2: #{tpu_custom_call.1} parent=1 // loop_pre_header
      _
    $region3: #{tpu_custom_call.1} parent=1 // loop_header
      %s28 = sphi 0, %s32
      %p29 = scmp.ge.s32.totalorder %s28, 4
      %s38 = sphi 0, %s40
      %s41 = sphi 0, %s38
      %s42 = sphi 0, %s41
      %s58 = sphi 0, %s42
      %s64 = sphi 0, %s66
      %s67 = sphi 0, %s64
      %s68 = sphi 0, %s67
      %s84 = sphi 0, %s68
      %s90 = sphi 0, %s92
      %s93 = sphi 0, %s90
      %s94 = sphi 0, %s93
      %s110 = sphi 0, %s94
      %s114 = sphi 0, %s114
      %s116 = sphi 0, %s114
      %s117 = sphi 0, %s116
      %s131 = sphi 0, %s117
      %s135 = sphi 0, %s135
      %s137 = sphi 0, %s135
      %s138 = sphi 0, %s137
      %s152 = sphi 0, %s138
      %s156 = sphi 0, %s156
      %s158 = sphi 0, %s156
      %s159 = sphi 0, %s158
      %s173 = sphi 0, %s159
      %s177 = sphi 0, %s177
      %s179 = sphi 0, %s177
      %s180 = sphi 0, %s179
      %s194 = sphi 0, %s180
      %s198 = sphi 0, %s198
      %s200 = sphi 0, %s198
      %s201 = sphi 0, %s200
      %s215 = sphi 0, %s201
      %s219 = sphi 0, %s219
      %s221 = sphi 0, %s219
      %s222 = sphi 0, %s221
      %s236 = sphi 0, %s222
      %s240 = sphi 0, %s240
      %s242 = sphi 0, %s240
      %s243 = sphi 0, %s242
      %s257 = sphi 0, %s243
      %s261 = sphi 0, %s261
      %s263 = sphi 0, %s261
      %s264 = sphi 0, %s263
      %s278 = sphi 0, %s264
      %s282 = sphi 0, %s282
      %s284 = sphi 0, %s282
      %s285 = sphi 0, %s284
      %s299 = sphi 0, %s285
      %s303 = sphi 0, %s303
      %s305 = sphi 0, %s303
      %s306 = sphi 0, %s305
      %s320 = sphi 0, %s306
      %s326 = sphi 0, %s328
      %s329 = sphi 0, %s326
      %s330 = sphi 0, %s329
      %s346 = sphi 0, %s330
      %s352 = sphi 0, %s354
      %s355 = sphi 0, %s352
      %s356 = sphi 0, %s355
      %s372 = sphi 0, %s356
      %s378 = sphi 0, %s380
      %s381 = sphi 0, %s378
      %s382 = sphi 0, %s381
      %s398 = sphi 0, %s382
    $region4: #{tpu_custom_call.1} parent=1 // loop_header_branch
      %31 = sbr.rel (%p29) target = $region8
    $region5: #{tpu_custom_call.1} parent=1 // loop_body
      %s33 = ssub.s32 %s28, 1
      %s34 = ssub.s32 %s28, 2
      %s35 = sadd.s32 %s28, 1
      %s36 = ssub.s32 %s28, %s35
      %p37 = scmp.eq.s32.totalorder %s36, 0
      %s39 = sadd.s32 %s38, 1
      %s40 = scalar_select %p37, %s38, %s39
      %p43 = pneg %p37
      %p44 = scmp.eq.s32.totalorder %s28, 1
      %p45 = por %p43, %p44
      %p46 = scmp.ne.s32.totalorder %s38, %s41
      %p47 = scmp.eq.s32.totalorder %s28, 0
      %p48 = por %p46, %p47
      %p49 = scmp.ne.s32.totalorder %s38, %s41
      %p50 = scmp.eq.s32.totalorder %s33, 1
      %p51 = por %p49, %p50
      %p52 = scmp.ne.s32.totalorder %s41, %s42
      %p53 = scmp.eq.s32.totalorder %s33, 0
      %p54 = por %p52, %p53
      %p55 = scmp.ne.s32.totalorder %s41, %s42
      %p56 = scmp.eq.s32.totalorder %s34, 1
      %p57 = por %p55, %p56
      %p59 = scmp.ne.s32.totalorder %s42, %s58
      %p60 = scmp.eq.s32.totalorder %s34, 0
      %p61 = por %p59, %p60
      %s62 = ssub.s32 %s28, %s35
      %p63 = scmp.eq.s32.totalorder %s62, 0
      %s65 = sadd.s32 %s64, 1
      %s66 = scalar_select %p63, %s64, %s65
      %p69 = pneg %p63
      %p70 = scmp.eq.s32.totalorder %s28, 1
      %p71 = por %p69, %p70
      %p72 = scmp.ne.s32.totalorder %s64, %s67
      %p73 = scmp.eq.s32.totalorder %s28, 0
      %p74 = por %p72, %p73
      %p75 = scmp.ne.s32.totalorder %s64, %s67
      %p76 = scmp.eq.s32.totalorder %s33, 1
      %p77 = por %p75, %p76
      %p78 = scmp.ne.s32.totalorder %s67, %s68
      %p79 = scmp.eq.s32.totalorder %s33, 0
      %p80 = por %p78, %p79
      %p81 = scmp.ne.s32.totalorder %s67, %s68
      %p82 = scmp.eq.s32.totalorder %s34, 1
      %p83 = por %p81, %p82
      %p85 = scmp.ne.s32.totalorder %s68, %s84
      %p86 = scmp.eq.s32.totalorder %s34, 0
      %p87 = por %p85, %p86
      %s88 = ssub.s32 %s28, %s35
      %p89 = scmp.eq.s32.totalorder %s88, 0
      %s91 = sadd.s32 %s90, 1
      %s92 = scalar_select %p89, %s90, %s91
      %p95 = pneg %p89
      %p96 = scmp.eq.s32.totalorder %s28, 1
      %p97 = por %p95, %p96
      %p98 = scmp.ne.s32.totalorder %s90, %s93
      %p99 = scmp.eq.s32.totalorder %s28, 0
      %p100 = por %p98, %p99
      %p101 = scmp.ne.s32.totalorder %s90, %s93
      %p102 = scmp.eq.s32.totalorder %s33, 1
      %p103 = por %p101, %p102
      %p104 = scmp.ne.s32.totalorder %s93, %s94
      %p105 = scmp.eq.s32.totalorder %s33, 0
      %p106 = por %p104, %p105
      %p107 = scmp.ne.s32.totalorder %s93, %s94
      %p108 = scmp.eq.s32.totalorder %s34, 1
      %p109 = por %p107, %p108
      %p111 = scmp.ne.s32.totalorder %s94, %s110
      %p112 = scmp.eq.s32.totalorder %s34, 0
      %p113 = por %p111, %p112
      %s115 = sadd.s32 %s114, 1
      %p118 = scmp.eq.s32.totalorder %s28, 1
      %p119 = scmp.ne.s32.totalorder %s114, %s116
      %p120 = scmp.eq.s32.totalorder %s28, 0
      %p121 = por %p119, %p120
      %p122 = scmp.ne.s32.totalorder %s114, %s116
      %p123 = scmp.eq.s32.totalorder %s33, 1
      %p124 = por %p122, %p123
      %p125 = scmp.ne.s32.totalorder %s116, %s117
      %p126 = scmp.eq.s32.totalorder %s33, 0
      %p127 = por %p125, %p126
      %p128 = scmp.ne.s32.totalorder %s116, %s117
      %p129 = scmp.eq.s32.totalorder %s34, 1
      %p130 = por %p128, %p129
      %p132 = scmp.ne.s32.totalorder %s117, %s131
      %p133 = scmp.eq.s32.totalorder %s34, 0
      %p134 = por %p132, %p133
      %s136 = sadd.s32 %s135, 1
      %p139 = scmp.eq.s32.totalorder %s28, 1
      %p140 = scmp.ne.s32.totalorder %s135, %s137
      %p141 = scmp.eq.s32.totalorder %s28, 0
      %p142 = por %p140, %p141
      %p143 = scmp.ne.s32.totalorder %s135, %s137
      %p144 = scmp.eq.s32.totalorder %s33, 1
      %p145 = por %p143, %p144
      %p146 = scmp.ne.s32.totalorder %s137, %s138
      %p147 = scmp.eq.s32.totalorder %s33, 0
      %p148 = por %p146, %p147
      %p149 = scmp.ne.s32.totalorder %s137, %s138
      %p150 = scmp.eq.s32.totalorder %s34, 1
      %p151 = por %p149, %p150
      %p153 = scmp.ne.s32.totalorder %s138, %s152
      %p154 = scmp.eq.s32.totalorder %s34, 0
      %p155 = por %p153, %p154
      %s157 = sadd.s32 %s156, 1
      %p160 = scmp.eq.s32.totalorder %s28, 1
      %p161 = scmp.ne.s32.totalorder %s156, %s158
      %p162 = scmp.eq.s32.totalorder %s28, 0
      %p163 = por %p161, %p162
      %p164 = scmp.ne.s32.totalorder %s156, %s158
      %p165 = scmp.eq.s32.totalorder %s33, 1
      %p166 = por %p164, %p165
      %p167 = scmp.ne.s32.totalorder %s158, %s159
      %p168 = scmp.eq.s32.totalorder %s33, 0
      %p169 = por %p167, %p168
      %p170 = scmp.ne.s32.totalorder %s158, %s159
      %p171 = scmp.eq.s32.totalorder %s34, 1
      %p172 = por %p170, %p171
      %p174 = scmp.ne.s32.totalorder %s159, %s173
      %p175 = scmp.eq.s32.totalorder %s34, 0
      %p176 = por %p174, %p175
      %s178 = sadd.s32 %s177, 1
      %p181 = scmp.eq.s32.totalorder %s28, 1
      %p182 = scmp.ne.s32.totalorder %s177, %s179
      %p183 = scmp.eq.s32.totalorder %s28, 0
      %p184 = por %p182, %p183
      %p185 = scmp.ne.s32.totalorder %s177, %s179
      %p186 = scmp.eq.s32.totalorder %s33, 1
      %p187 = por %p185, %p186
      %p188 = scmp.ne.s32.totalorder %s179, %s180
      %p189 = scmp.eq.s32.totalorder %s33, 0
      %p190 = por %p188, %p189
      %p191 = scmp.ne.s32.totalorder %s179, %s180
      %p192 = scmp.eq.s32.totalorder %s34, 1
      %p193 = por %p191, %p192
      %p195 = scmp.ne.s32.totalorder %s180, %s194
      %p196 = scmp.eq.s32.totalorder %s34, 0
      %p197 = por %p195, %p196
      %s199 = sadd.s32 %s198, 1
      %p202 = scmp.eq.s32.totalorder %s28, 1
      %p203 = scmp.ne.s32.totalorder %s198, %s200
      %p204 = scmp.eq.s32.totalorder %s28, 0
      %p205 = por %p203, %p204
      %p206 = scmp.ne.s32.totalorder %s198, %s200
      %p207 = scmp.eq.s32.totalorder %s33, 1
      %p208 = por %p206, %p207
      %p209 = scmp.ne.s32.totalorder %s200, %s201
      %p210 = scmp.eq.s32.totalorder %s33, 0
      %p211 = por %p209, %p210
      %p212 = scmp.ne.s32.totalorder %s200, %s201
      %p213 = scmp.eq.s32.totalorder %s34, 1
      %p214 = por %p212, %p213
      %p216 = scmp.ne.s32.totalorder %s201, %s215
      %p217 = scmp.eq.s32.totalorder %s34, 0
      %p218 = por %p216, %p217
      %s220 = sadd.s32 %s219, 1
      %p223 = scmp.eq.s32.totalorder %s28, 1
      %p224 = scmp.ne.s32.totalorder %s219, %s221
      %p225 = scmp.eq.s32.totalorder %s28, 0
      %p226 = por %p224, %p225
      %p227 = scmp.ne.s32.totalorder %s219, %s221
      %p228 = scmp.eq.s32.totalorder %s33, 1
      %p229 = por %p227, %p228
      %p230 = scmp.ne.s32.totalorder %s221, %s222
      %p231 = scmp.eq.s32.totalorder %s33, 0
      %p232 = por %p230, %p231
      %p233 = scmp.ne.s32.totalorder %s221, %s222
      %p234 = scmp.eq.s32.totalorder %s34, 1
      %p235 = por %p233, %p234
      %p237 = scmp.ne.s32.totalorder %s222, %s236
      %p238 = scmp.eq.s32.totalorder %s34, 0
      %p239 = por %p237, %p238
      %s241 = sadd.s32 %s240, 1
      %p244 = scmp.eq.s32.totalorder %s28, 1
      %p245 = scmp.ne.s32.totalorder %s240, %s242
      %p246 = scmp.eq.s32.totalorder %s28, 0
      %p247 = por %p245, %p246
      %p248 = scmp.ne.s32.totalorder %s240, %s242
      %p249 = scmp.eq.s32.totalorder %s33, 1
      %p250 = por %p248, %p249
      %p251 = scmp.ne.s32.totalorder %s242, %s243
      %p252 = scmp.eq.s32.totalorder %s33, 0
      %p253 = por %p251, %p252
      %p254 = scmp.ne.s32.totalorder %s242, %s243
      %p255 = scmp.eq.s32.totalorder %s34, 1
      %p256 = por %p254, %p255
      %p258 = scmp.ne.s32.totalorder %s243, %s257
      %p259 = scmp.eq.s32.totalorder %s34, 0
      %p260 = por %p258, %p259
      %s262 = sadd.s32 %s261, 1
      %p265 = scmp.eq.s32.totalorder %s28, 1
      %p266 = scmp.ne.s32.totalorder %s261, %s263
      %p267 = scmp.eq.s32.totalorder %s28, 0
      %p268 = por %p266, %p267
      %p269 = scmp.ne.s32.totalorder %s261, %s263
      %p270 = scmp.eq.s32.totalorder %s33, 1
      %p271 = por %p269, %p270
      %p272 = scmp.ne.s32.totalorder %s263, %s264
      %p273 = scmp.eq.s32.totalorder %s33, 0
      %p274 = por %p272, %p273
      %p275 = scmp.ne.s32.totalorder %s263, %s264
      %p276 = scmp.eq.s32.totalorder %s34, 1
      %p277 = por %p275, %p276
      %p279 = scmp.ne.s32.totalorder %s264, %s278
      %p280 = scmp.eq.s32.totalorder %s34, 0
      %p281 = por %p279, %p280
      %s283 = sadd.s32 %s282, 1
      %p286 = scmp.eq.s32.totalorder %s28, 1
      %p287 = scmp.ne.s32.totalorder %s282, %s284
      %p288 = scmp.eq.s32.totalorder %s28, 0
      %p289 = por %p287, %p288
      %p290 = scmp.ne.s32.totalorder %s282, %s284
      %p291 = scmp.eq.s32.totalorder %s33, 1
      %p292 = por %p290, %p291
      %p293 = scmp.ne.s32.totalorder %s284, %s285
      %p294 = scmp.eq.s32.totalorder %s33, 0
      %p295 = por %p293, %p294
      %p296 = scmp.ne.s32.totalorder %s284, %s285
      %p297 = scmp.eq.s32.totalorder %s34, 1
      %p298 = por %p296, %p297
      %p300 = scmp.ne.s32.totalorder %s285, %s299
      %p301 = scmp.eq.s32.totalorder %s34, 0
      %p302 = por %p300, %p301
      %s304 = sadd.s32 %s303, 1
      %p307 = scmp.eq.s32.totalorder %s28, 1
      %p308 = scmp.ne.s32.totalorder %s303, %s305
      %p309 = scmp.eq.s32.totalorder %s28, 0
      %p310 = por %p308, %p309
      %p311 = scmp.ne.s32.totalorder %s303, %s305
      %p312 = scmp.eq.s32.totalorder %s33, 1
      %p313 = por %p311, %p312
      %p314 = scmp.ne.s32.totalorder %s305, %s306
      %p315 = scmp.eq.s32.totalorder %s33, 0
      %p316 = por %p314, %p315
      %p317 = scmp.ne.s32.totalorder %s305, %s306
      %p318 = scmp.eq.s32.totalorder %s34, 1
      %p319 = por %p317, %p318
      %p321 = scmp.ne.s32.totalorder %s306, %s320
      %p322 = scmp.eq.s32.totalorder %s34, 0
      %p323 = por %p321, %p322
      %s324 = ssub.s32 %s28, %s35
      %p325 = scmp.eq.s32.totalorder %s324, 0
      %s327 = sadd.s32 %s326, 1
      %s328 = scalar_select %p325, %s326, %s327
      %p331 = pneg %p325
      %p332 = scmp.eq.s32.totalorder %s28, 1
      %p333 = por %p331, %p332
      %p334 = scmp.ne.s32.totalorder %s326, %s329
      %p335 = scmp.eq.s32.totalorder %s28, 0
      %p336 = por %p334, %p335
      %p337 = scmp.ne.s32.totalorder %s326, %s329
      %p338 = scmp.eq.s32.totalorder %s33, 1
      %p339 = por %p337, %p338
      %p340 = scmp.ne.s32.totalorder %s329, %s330
      %p341 = scmp.eq.s32.totalorder %s33, 0
      %p342 = por %p340, %p341
      %p343 = scmp.ne.s32.totalorder %s329, %s330
      %p344 = scmp.eq.s32.totalorder %s34, 1
      %p345 = por %p343, %p344
      %p347 = scmp.ne.s32.totalorder %s330, %s346
      %p348 = scmp.eq.s32.totalorder %s34, 0
      %p349 = por %p347, %p348
      %s350 = ssub.s32 %s28, %s35
      %p351 = scmp.eq.s32.totalorder %s350, 0
      %s353 = sadd.s32 %s352, 1
      %s354 = scalar_select %p351, %s352, %s353
      %p357 = pneg %p351
      %p358 = scmp.eq.s32.totalorder %s28, 1
      %p359 = por %p357, %p358
      %p360 = scmp.ne.s32.totalorder %s352, %s355
      %p361 = scmp.eq.s32.totalorder %s28, 0
      %p362 = por %p360, %p361
      %p363 = scmp.ne.s32.totalorder %s352, %s355
      %p364 = scmp.eq.s32.totalorder %s33, 1
      %p365 = por %p363, %p364
      %p366 = scmp.ne.s32.totalorder %s355, %s356
      %p367 = scmp.eq.s32.totalorder %s33, 0
      %p368 = por %p366, %p367
      %p369 = scmp.ne.s32.totalorder %s355, %s356
      %p370 = scmp.eq.s32.totalorder %s34, 1
      %p371 = por %p369, %p370
      %p373 = scmp.ne.s32.totalorder %s356, %s372
      %p374 = scmp.eq.s32.totalorder %s34, 0
      %p375 = por %p373, %p374
      %s376 = ssub.s32 %s28, %s35
      %p377 = scmp.eq.s32.totalorder %s376, 0
      %s379 = sadd.s32 %s378, 1
      %s380 = scalar_select %p377, %s378, %s379
      %p383 = pneg %p377
      %p384 = scmp.eq.s32.totalorder %s28, 1
      %p385 = por %p383, %p384
      %p386 = scmp.ne.s32.totalorder %s378, %s381
      %p387 = scmp.eq.s32.totalorder %s28, 0
      %p388 = por %p386, %p387
      %p389 = scmp.ne.s32.totalorder %s378, %s381
      %p390 = scmp.eq.s32.totalorder %s33, 1
      %p391 = por %p389, %p390
      %p392 = scmp.ne.s32.totalorder %s381, %s382
      %p393 = scmp.eq.s32.totalorder %s33, 0
      %p394 = por %p392, %p393
      %p395 = scmp.ne.s32.totalorder %s381, %s382
      %p396 = scmp.eq.s32.totalorder %s34, 1
      %p397 = por %p395, %p396
      %p399 = scmp.ne.s32.totalorder %s382, %s398
      %p400 = scmp.eq.s32.totalorder %s34, 0
      %p401 = por %p399, %p400
      %p402 = scmp.le.s32.totalorder 1, %s28
      %p403 = scmp.lt.s32.totalorder %s28, 3
      %p404 = pnand %p402, %p403
      %p405 = pneg %p404
      // Predicated region
      $region9: #{tpu_custom_call.1} parent=5 // pred_check
        _
      $region10: #{tpu_custom_call.1} parent=5 // pred_check_branch
        %407 = sbr.rel (%p404) target = $region12
      $region11: #{tpu_custom_call.1} parent=5 // pred_region
        %s408 = ssub.s32 %s28, 1
        // Predicated region
        $region13: #{tpu_custom_call.1} parent=11 // pred_check
          %p409 = pneg %p127
        $region14: #{tpu_custom_call.1} parent=11 // pred_check_branch
          %411 = sbr.rel (%p409) target = $region16
        $region15: #{tpu_custom_call.1} parent=11 // pred_region
          _
        $region16: #{tpu_custom_call.1} parent=11 // pred_fallthru
          _
        // Predicated region
        $region17: #{tpu_custom_call.1} parent=11 // pred_check
          %p412 = pneg %p148
        $region18: #{tpu_custom_call.1} parent=11 // pred_check_branch
          %414 = sbr.rel (%p412) target = $region20
        $region19: #{tpu_custom_call.1} parent=11 // pred_region
          _
        $region20: #{tpu_custom_call.1} parent=11 // pred_fallthru
          _
        // Predicated region
        $region21: #{tpu_custom_call.1} parent=11 // pred_check
          %p415 = pneg %p169
        $region22: #{tpu_custom_call.1} parent=11 // pred_check_branch
          %417 = sbr.rel (%p415) target = $region24
        $region23: #{tpu_custom_call.1} parent=11 // pred_region
          _
        $region24: #{tpu_custom_call.1} parent=11 // pred_fallthru
          _
        // Predicated region
        $region25: #{tpu_custom_call.1} parent=11 // pred_check
          %p418 = pneg %p190
        $region26: #{tpu_custom_call.1} parent=11 // pred_check_branch
          %420 = sbr.rel (%p418) target = $region28
        $region27: #{tpu_custom_call.1} parent=11 // pred_region
          _
        $region28: #{tpu_custom_call.1} parent=11 // pred_fallthru
          _
        // Predicated region
        $region29: #{tpu_custom_call.1} parent=11 // pred_check
          %p421 = pneg %p211
        $region30: #{tpu_custom_call.1} parent=11 // pred_check_branch
          %423 = sbr.rel (%p421) target = $region32
        $region31: #{tpu_custom_call.1} parent=11 // pred_region
          _
        $region32: #{tpu_custom_call.1} parent=11 // pred_fallthru
          _
        // Predicated region
        $region33: #{tpu_custom_call.1} parent=11 // pred_check
          %p424 = pneg %p232
        $region34: #{tpu_custom_call.1} parent=11 // pred_check_branch
          %426 = sbr.rel (%p424) target = $region36
        $region35: #{tpu_custom_call.1} parent=11 // pred_region
          _
        $region36: #{tpu_custom_call.1} parent=11 // pred_fallthru
          _
        // Predicated region
        $region37: #{tpu_custom_call.1} parent=11 // pred_check
          %p427 = pneg %p253
        $region38: #{tpu_custom_call.1} parent=11 // pred_check_branch
          %429 = sbr.rel (%p427) target = $region40
        $region39: #{tpu_custom_call.1} parent=11 // pred_region
          _
        $region40: #{tpu_custom_call.1} parent=11 // pred_fallthru
          _
        // Predicated region
        $region41: #{tpu_custom_call.1} parent=11 // pred_check
          %p430 = pneg %p274
        $region42: #{tpu_custom_call.1} parent=11 // pred_check_branch
          %432 = sbr.rel (%p430) target = $region44
        $region43: #{tpu_custom_call.1} parent=11 // pred_region
          _
        $region44: #{tpu_custom_call.1} parent=11 // pred_fallthru
          _
        // Predicated region
        $region45: #{tpu_custom_call.1} parent=11 // pred_check
          %p433 = pneg %p295
        $region46: #{tpu_custom_call.1} parent=11 // pred_check_branch
          %435 = sbr.rel (%p433) target = $region48
        $region47: #{tpu_custom_call.1} parent=11 // pred_region
          _
        $region48: #{tpu_custom_call.1} parent=11 // pred_fallthru
          _
        // Predicated region
        $region49: #{tpu_custom_call.1} parent=11 // pred_check
          %p436 = pneg %p316
        $region50: #{tpu_custom_call.1} parent=11 // pred_check_branch
          %438 = sbr.rel (%p436) target = $region52
        $region51: #{tpu_custom_call.1} parent=11 // pred_region
          _
        $region52: #{tpu_custom_call.1} parent=11 // pred_fallthru
          _
      $region12: #{tpu_custom_call.1} parent=5 // pred_fallthru
        _
      %p439 = scmp.lt.s32.totalorder %s28, 2
      // Predicated region
      $region53: #{tpu_custom_call.1} parent=5 // pred_check
        %p440 = pneg %p439
      $region54: #{tpu_custom_call.1} parent=5 // pred_check_branch
        %442 = sbr.rel (%p440) target = $region56
      $region55: #{tpu_custom_call.1} parent=5 // pred_region
        // Predicated region
        $region57: #{tpu_custom_call.1} parent=55 // pred_check
          %p443 = pneg %p48
        $region58: #{tpu_custom_call.1} parent=55 // pred_check_branch
          %445 = sbr.rel (%p443) target = $region60
        $region59: #{tpu_custom_call.1} parent=55 // pred_region
          %p446 = scmp.lt.s32.totalorder %s28, 1
          %s447 = scalar_select %p446, %s28, 1
          %s448 = smul.addr %s447, 2
          %s449 = smul.addr %s448, 8
          %s450 = scalar_lea.vmem %s0, %s449
        $region60: #{tpu_custom_call.1} parent=55 // pred_fallthru
          _
        // Predicated region
        $region61: #{tpu_custom_call.1} parent=55 // pred_check
          %p451 = pneg %p74
        $region62: #{tpu_custom_call.1} parent=55 // pred_check_branch
          %453 = sbr.rel (%p451) target = $region64
        $region63: #{tpu_custom_call.1} parent=55 // pred_region
          %p454 = scmp.lt.s32.totalorder %s28, 1
          %s455 = scalar_select %p454, %s28, 1
          %s456 = smul.addr %s455, 32
          %s457 = smul.addr %s456, 8
          %s458 = scalar_lea.vmem %s1, %s457
        $region64: #{tpu_custom_call.1} parent=55 // pred_fallthru
          _
        // Predicated region
        $region65: #{tpu_custom_call.1} parent=55 // pred_check
          %p459 = pneg %p100
        $region66: #{tpu_custom_call.1} parent=55 // pred_check_branch
          %461 = sbr.rel (%p459) target = $region68
        $region67: #{tpu_custom_call.1} parent=55 // pred_region
          %p462 = scmp.lt.s32.totalorder %s28, 1
          %s463 = scalar_select %p462, %s28, 1
          %s464 = smul.addr %s463, 32
          %s465 = smul.addr %s464, 8
          %s466 = scalar_lea.vmem %s2, %s465
        $region68: #{tpu_custom_call.1} parent=55 // pred_fallthru
          _
      $region56: #{tpu_custom_call.1} parent=5 // pred_fallthru
        _
      %p467 = scmp.le.s32.totalorder 1, %s28
      %p468 = scmp.lt.s32.totalorder %s28, 3
      %p469 = pnand %p467, %p468
      %p470 = pneg %p469
      // Predicated region
      $region69: #{tpu_custom_call.1} parent=5 // pred_check
        _
      $region70: #{tpu_custom_call.1} parent=5 // pred_check_branch
        %472 = sbr.rel (%p469) target = $region72
      $region71: #{tpu_custom_call.1} parent=5 // pred_region
        %s473 = ssub.s32 %s28, 1
        %p474 = scmp.lt.s32.totalorder %s33, 1
        %s475 = scalar_select %p474, %s33, 1
        %s476 = smul.addr %s475, 2
        %s477 = smul.addr %s476, 8
        %s478 = scalar_lea.vmem %s0, %s477
        %p479 = pneg %p54
        %p480 = pneg %p51
        %p481 = scmp.lt.s32.totalorder %s33, 1
        %s482 = scalar_select %p481, %s33, 1
        %s483 = smul.addr %s482, 32
        %s484 = smul.addr %s483, 8
        %s485 = scalar_lea.vmem %s1, %s484
        %p486 = pneg %p80
        %p487 = pneg %p77
        %p488 = scmp.lt.s32.totalorder %s33, 1
        %s489 = scalar_select %p488, %s33, 1
        %s490 = smul.addr %s489, 32
        %s491 = smul.addr %s490, 8
        %s492 = scalar_lea.vmem %s2, %s491
        %p493 = pneg %p106
        %p494 = pneg %p103
        %p495 = pneg %p127
        %p496 = pneg %p124
        %p497 = pneg %p148
        %p498 = pneg %p145
        %p499 = pneg %p169
        %p500 = pneg %p166
        %p501 = pneg %p190
        %p502 = pneg %p187
        %p503 = pneg %p211
        %p504 = pneg %p208
        %p505 = pneg %p232
        %p506 = pneg %p229
        %p507 = pneg %p253
        %p508 = pneg %p250
        %p509 = pneg %p274
        %p510 = pneg %p271
        %p511 = pneg %p295
        %p512 = pneg %p292
        %p513 = pneg %p316
        %p514 = pneg %p313
        %p515 = pneg %p342
        %p516 = pneg %p339
        %s517 = sand.u32 %s329, 1
        %s518 = scalar_lea.sflag [#allocation3], %s517
        %s519 = sand.u32 %s329, 1
        %s520 = smul.addr %s519, 16
        %s521 = scalar_lea.vmem [#allocation2], %s520
        %p522 = pneg %p368
        %p523 = pneg %p365
        %s524 = sand.u32 %s33, 1
        %s525 = scalar_lea.sflag [#allocation5], %s524
        %s526 = sand.u32 %s355, 1
        %s527 = smul.addr %s526, 256
        %s528 = scalar_lea.vmem [#allocation4], %s527
        %p529 = pneg %p394
        %p530 = pneg %p391
        %s531 = sand.u32 %s33, 1
        %s532 = scalar_lea.sflag [#allocation5], %s531
        %s533 = sand.u32 %s381, 1
        %s534 = smul.addr %s533, 256
        %s535 = scalar_lea.vmem [#allocation6], %s534
        %p536 = scmp.lt.s32.totalorder %s33, 1
        %s537 = scalar_select %p536, %s33, 1
        %s538 = smul.addr %s537, 2
        %s539 = smul.addr %s538, 8
        %s540 = scalar_lea.vmem %s0, %s539
        %p541 = scmp.lt.s32.totalorder %s33, 1
        %s542 = scalar_select %p541, %s33, 1
        %s543 = smul.addr %s542, 32
        %s544 = smul.addr %s543, 8
        %s545 = scalar_lea.vmem %s1, %s544
        %p546 = scmp.lt.s32.totalorder %s33, 1
        %s547 = scalar_select %p546, %s33, 1
        %s548 = smul.addr %s547, 32
        %s549 = smul.addr %s548, 8
        %s550 = scalar_lea.vmem %s2, %s549
        %v551 = vld [vmem:[%s540] sm:$0xff]
        %v552 = vld [vmem:[%s540 + $0x8] sm:$0xff]
        %v553 = vld [vmem:[%s5] sm:$0x1]
        %v554 = vld [vmem:[%s6] sm:$0x1]
        %556 = vset.pattern.permute.xlu0 0
        %557 = vperm.xlu0 %556, %v551
        %v558 = vpop.permute.xlu0 %557
        %561 = vset.pattern.permute.xlu0 0
        %562 = vperm.xlu0 %561, %v552
        %v563 = vpop.permute.xlu0 %562
        %v566 = vlaneseq
        %v567 = vshrl.u32 %v566, 7
        %v568 = vsub.s32 0, %v567
        %v569 = vrot.slane %v553, %v568
        %v571 = vmul.f32 %v558, %v569
        %v572 = vmul.f32 %v563, %v569
        %v574 = vlaneseq
        %v575 = vshrl.u32 %v574, 7
        %v576 = vsub.s32 0, %v575
        %v577 = vrot.slane %v554, %v576
        %v579 = vadd.f32 %v571, %v577
        %v580 = vadd.f32 %v572, %v577
        %v581 = vld [vmem:[%s9] sm:$0xff]
        %v582 = vld [vmem:[%s9 + $0x8] sm:$0xff]
        %v583 = vld [vmem:[%s9 + $0x10] sm:$0xff]
        %v584 = vld [vmem:[%s9 + $0x18] sm:$0xff]
        %v585 = vld [vmem:[%s10] sm:$0x1]
        %v587 = vlaneseq
        %v588 = vshrl.u32 %v587, 7
        %v589 = vsub.s32 0, %v588
        %v590 = vrot.slane %v585, %v589
        %vm592 = vcmask 261120
        %v594 = vsel %vm592, %v579, 0
        %v597 = vsel %vm592, %v580, 0
        %599 = vmatprep.subr.mxu0 0.0
        %600 = vmatpush1.msra.mxu0 %v581
        %601 = vmatprep.subr.mxu0 0.0
        %602 = vmatpush1.msra.mxu0 %v582
        %603 = vmatprep.subr.mxu0 0.0
        %604 = vmatpush1.msra.mxu0 %v583
        %605 = vmatprep.subr.mxu0 0.0
        %606 = vmatpush1.msra.mxu0 %v584
        %607 = vmatprep.subr.mxu0 0.0
        %608 = vmatpush1.msra.mxu0 0.0
        %609 = vmatprep.subr.mxu0 0.0
        %610 = vmatpush1.msra.mxu0 0.0
        %611 = vmatprep.subr.mxu0 0.0
        %612 = vmatpush1.msra.mxu0 0.0
        %613 = vmatprep.subr.mxu0 0.0
        %614 = vmatpush1.msra.mxu0 0.0
        %615 = vmatprep.subr.mxu0 0.0
        %616 = vmatpush1.msra.mxu0 0.0
        %617 = vmatprep.subr.mxu0 0.0
        %618 = vmatpush1.msra.mxu0 0.0
        %619 = vmatprep.subr.mxu0 0.0
        %620 = vmatpush1.msra.mxu0 0.0
        %621 = vmatprep.subr.mxu0 0.0
        %622 = vmatpush1.msra.mxu0 0.0
        %623 = vmatprep.subr.mxu0 0.0
        %624 = vmatpush1.msra.mxu0 0.0
        %625 = vmatprep.subr.mxu0 0.0
        %626 = vmatpush1.msra.mxu0 0.0
        %627 = vmatprep.subr.mxu0 0.0
        %628 = vmatpush1.msra.mxu0 0.0
        %629 = vmatprep.subr.mxu0 0.0
        %630 = vmatpush1.msra.mxu0 0.0
        %631 = vmatprep.subr.mxu0 0.0
        %632 = vmatpush1.msra.mxu0 0.0
        %633 = vmatprep.subr.mxu0 0.0
        %634 = vmatpush1.msra.mxu0 0.0
        %635 = vmatprep.subr.mxu0 0.0
        %636 = vmatpush1.msra.mxu0 0.0
        %637 = vmatprep.subr.mxu0 0.0
        %638 = vmatpush1.msra.mxu0 0.0
        %639 = vmatprep.subr.mxu0 0.0
        %640 = vmatpush1.msra.mxu0 0.0
        %641 = vmatprep.subr.mxu0 0.0
        %642 = vmatpush1.msra.mxu0 0.0
        %643 = vmatprep.subr.mxu0 0.0
        %644 = vmatpush1.msra.mxu0 0.0
        %645 = vmatprep.subr.mxu0 0.0
        %646 = vmatpush1.msra.mxu0 0.0
        %647 = vmatprep.subr.mxu0 0.0
        %648 = vmatpush1.msra.mxu0 0.0
        %649 = vmatprep.subr.mxu0 0.0
        %650 = vmatpush1.msra.mxu0 0.0
        %651 = vmatprep.subr.mxu0 0.0
        %652 = vmatpush1.msra.mxu0 0.0
        %653 = vmatprep.subr.mxu0 0.0
        %654 = vmatpush1.msra.mxu0 0.0
        %655 = vmatprep.subr.mxu0 0.0
        %656 = vmatpush1.msra.mxu0 0.0
        %657 = vmatprep.subr.mxu0 0.0
        %658 = vmatpush1.msra.mxu0 0.0
        %659 = vmatprep.subr.mxu0 0.0
        %660 = vmatpush1.msra.mxu0 0.0
        %661 = vmatprep.subr.mxu0 0.0
        %662 = vmatpush1.msra.mxu0 0.0
        %663 = vmatprep.mubr.f32.mxu0 0.0
        %664 = vmatmul.mubr.f32.gmra.mrb[0].mxu0 %v594
        %v665 = vpop.f32.mrb[0].mxu0
        %v666 = vadd.f32 %v590, %v665
        %v667 = vpop.f32.mrb[0].mxu0
        %668 = vmatprep.mubr.f32.mxu0 0.0
        %669 = vmatmul.mubr.f32.gmra.mrb[0].mxu0 %v597
        %v670 = vpop.f32.mrb[0].mxu0
        %v671 = vadd.f32 %v590, %v670
        %v672 = vpop.f32.mrb[0].mxu0
        %673 = vdwg.mxu0
        %v674 = vld [vmem:[%s3] sm:$0xff]
        %v675 = vld [vmem:[%s3 + $0x8] sm:$0xff]
        %v676 = vadd.f32 %v666, %v674
        %v677 = vadd.f32 %v671, %v675
        %v678 = vlaneseq
        %v679 = vshrl.u32 %v678, 7
        %v680 = vadd.s32 %v679, 8
        %v681 = vld [vmem:[%s4] sm:$0xff]
        %v682 = vld [vmem:[%s4 + $0x8] sm:$0xff]
        %vm683 = vcmp.ge.s32.totalorder %v679, 1
        %vm684 = vcmp.ge.s32.totalorder %v680, 1
        %vm685 = vcmp.lt.s32.totalorder %v679, 10
        %vm686 = vcmp.lt.s32.totalorder %v680, 10
        %vm687 = vmand %vm683, %vm685
        %vm688 = vmand %vm684, %vm686
        %v689 = vsel %vm687, %v676, 0.0
        %v690 = vsel %vm688, %v677, 0.0
        %v691 = vadd.f32 %v681, %v689
        %v692 = vadd.f32 %v682, %v690
        %693 = vst.msk [vmem:[%s521] sm:$0xff] %vm592, %v691
        %694 = vst.msk [vmem:[%s521 + $0x8] sm:$0xff] %vm592, %v692
        %vm695 = vmand 0, %vm683
        %vm696 = vmand 0, %vm684
        %vm697 = vmand 1, %vm683
        %vm698 = vmand 1, %vm684
        %vm699 = vmand %vm695, %vm685
        %vm700 = vmand %vm696, %vm686
        %vm701 = vmand %vm697, %vm685
        %vm702 = vmand %vm698, %vm686
        %v703 = vld [vmem:[%s545] sm:$0xff]
        %v704 = vld [vmem:[%s545 + $0x8] sm:$0xff]
        %v705 = vld [vmem:[%s545 + $0x10] sm:$0xff]
        %v706 = vld [vmem:[%s545 + $0x18] sm:$0xff]
        %v707 = vld [vmem:[%s545 + $0x20] sm:$0xff]
        %v708 = vld [vmem:[%s545 + $0x28] sm:$0xff]
        %v709 = vld [vmem:[%s545 + $0x30] sm:$0xff]
        %v710 = vld [vmem:[%s545 + $0x38] sm:$0xff]
        %v711 = vld [vmem:[%s545 + $0x40] sm:$0xff]
        %v712 = vld [vmem:[%s545 + $0x48] sm:$0xff]
        %v713 = vld [vmem:[%s545 + $0x50] sm:$0xff]
        %v714 = vld [vmem:[%s545 + $0x58] sm:$0xff]
        %v715 = vld [vmem:[%s545 + $0x60] sm:$0xff]
        %v716 = vld [vmem:[%s545 + $0x68] sm:$0xff]
        %v717 = vld [vmem:[%s545 + $0x70] sm:$0xff]
        %v718 = vld [vmem:[%s545 + $0x78] sm:$0xff]
        %v719 = vld [vmem:[%s545 + $0x80] sm:$0xff]
        %v720 = vld [vmem:[%s545 + $0x88] sm:$0xff]
        %v721 = vld [vmem:[%s545 + $0x90] sm:$0xff]
        %v722 = vld [vmem:[%s545 + $0x98] sm:$0xff]
        %v723 = vld [vmem:[%s545 + $0xa0] sm:$0xff]
        %v724 = vld [vmem:[%s545 + $0xa8] sm:$0xff]
        %v725 = vld [vmem:[%s545 + $0xb0] sm:$0xff]
        %v726 = vld [vmem:[%s545 + $0xb8] sm:$0xff]
        %v727 = vld [vmem:[%s545 + $0xc0] sm:$0xff]
        %v728 = vld [vmem:[%s545 + $0xc8] sm:$0xff]
        %v729 = vld [vmem:[%s545 + $0xd0] sm:$0xff]
        %v730 = vld [vmem:[%s545 + $0xd8] sm:$0xff]
        %v731 = vld [vmem:[%s545 + $0xe0] sm:$0xff]
        %v732 = vld [vmem:[%s545 + $0xe8] sm:$0xff]
        %v733 = vld [vmem:[%s545 + $0xf0] sm:$0xff]
        %v734 = vld [vmem:[%s545 + $0xf8] sm:$0xff]
        %v735 = vld [vmem:[%s7] sm:$0x1]
        %v736 = vld [vmem:[%s8] sm:$0x1]
        %738 = vset.pattern.permute.xlu0 0
        %739 = vperm.xlu0 %738, %v703
        %v740 = vpop.permute.xlu0 %739
        %743 = vset.pattern.permute.xlu0 0
        %744 = vperm.xlu0 %743, %v704
        %v745 = vpop.permute.xlu0 %744
        %748 = vset.pattern.permute.xlu0 0
        %749 = vperm.xlu0 %748, %v705
        %v750 = vpop.permute.xlu0 %749
        %753 = vset.pattern.permute.xlu0 0
        %754 = vperm.xlu0 %753, %v706
        %v755 = vpop.permute.xlu0 %754
        %758 = vset.pattern.permute.xlu0 0
        %759 = vperm.xlu0 %758, %v707
        %v760 = vpop.permute.xlu0 %759
        %763 = vset.pattern.permute.xlu0 0
        %764 = vperm.xlu0 %763, %v708
        %v765 = vpop.permute.xlu0 %764
        %768 = vset.pattern.permute.xlu0 0
        %769 = vperm.xlu0 %768, %v709
        %v770 = vpop.permute.xlu0 %769
        %773 = vset.pattern.permute.xlu0 0
        %774 = vperm.xlu0 %773, %v710
        %v775 = vpop.permute.xlu0 %774
        %778 = vset.pattern.permute.xlu0 0
        %779 = vperm.xlu0 %778, %v711
        %v780 = vpop.permute.xlu0 %779
        %783 = vset.pattern.permute.xlu0 0
        %784 = vperm.xlu0 %783, %v712
        %v785 = vpop.permute.xlu0 %784
        %788 = vset.pattern.permute.xlu0 0
        %789 = vperm.xlu0 %788, %v713
        %v790 = vpop.permute.xlu0 %789
        %793 = vset.pattern.permute.xlu0 0
        %794 = vperm.xlu0 %793, %v714
        %v795 = vpop.permute.xlu0 %794
        %798 = vset.pattern.permute.xlu0 0
        %799 = vperm.xlu0 %798, %v715
        %v800 = vpop.permute.xlu0 %799
        %803 = vset.pattern.permute.xlu0 0
        %804 = vperm.xlu0 %803, %v716
        %v805 = vpop.permute.xlu0 %804
        %808 = vset.pattern.permute.xlu0 0
        %809 = vperm.xlu0 %808, %v717
        %v810 = vpop.permute.xlu0 %809
        %813 = vset.pattern.permute.xlu0 0
        %814 = vperm.xlu0 %813, %v718
        %v815 = vpop.permute.xlu0 %814
        %818 = vset.pattern.permute.xlu0 0
        %819 = vperm.xlu0 %818, %v719
        %v820 = vpop.permute.xlu0 %819
        %823 = vset.pattern.permute.xlu0 0
        %824 = vperm.xlu0 %823, %v720
        %v825 = vpop.permute.xlu0 %824
        %828 = vset.pattern.permute.xlu0 0
        %829 = vperm.xlu0 %828, %v721
        %v830 = vpop.permute.xlu0 %829
        %833 = vset.pattern.permute.xlu0 0
        %834 = vperm.xlu0 %833, %v722
        %v835 = vpop.permute.xlu0 %834
        %838 = vset.pattern.permute.xlu0 0
        %839 = vperm.xlu0 %838, %v723
        %v840 = vpop.permute.xlu0 %839
        %843 = vset.pattern.permute.xlu0 0
        %844 = vperm.xlu0 %843, %v724
        %v845 = vpop.permute.xlu0 %844
        %848 = vset.pattern.permute.xlu0 0
        %849 = vperm.xlu0 %848, %v725
        %v850 = vpop.permute.xlu0 %849
        %853 = vset.pattern.permute.xlu0 0
        %854 = vperm.xlu0 %853, %v726
        %v855 = vpop.permute.xlu0 %854
        %858 = vset.pattern.permute.xlu0 0
        %859 = vperm.xlu0 %858, %v727
        %v860 = vpop.permute.xlu0 %859
        %863 = vset.pattern.permute.xlu0 0
        %864 = vperm.xlu0 %863, %v728
        %v865 = vpop.permute.xlu0 %864
        %868 = vset.pattern.permute.xlu0 0
        %869 = vperm.xlu0 %868, %v729
        %v870 = vpop.permute.xlu0 %869
        %873 = vset.pattern.permute.xlu0 0
        %874 = vperm.xlu0 %873, %v730
        %v875 = vpop.permute.xlu0 %874
        %878 = vset.pattern.permute.xlu0 0
        %879 = vperm.xlu0 %878, %v731
        %v880 = vpop.permute.xlu0 %879
        %883 = vset.pattern.permute.xlu0 0
        %884 = vperm.xlu0 %883, %v732
        %v885 = vpop.permute.xlu0 %884
        %888 = vset.pattern.permute.xlu0 0
        %889 = vperm.xlu0 %888, %v733
        %v890 = vpop.permute.xlu0 %889
        %893 = vset.pattern.permute.xlu0 0
        %894 = vperm.xlu0 %893, %v734
        %v895 = vpop.permute.xlu0 %894
        %v898 = vlaneseq
        %v899 = vshrl.u32 %v898, 7
        %v900 = vsub.s32 0, %v899
        %v901 = vrot.slane %v735, %v900
        %v903 = vmul.f32 %v740, %v901
        %v904 = vmul.f32 %v745, %v901
        %v905 = vmul.f32 %v750, %v901
        %v906 = vmul.f32 %v755, %v901
        %v907 = vmul.f32 %v760, %v901
        %v908 = vmul.f32 %v765, %v901
        %v909 = vmul.f32 %v770, %v901
        %v910 = vmul.f32 %v775, %v901
        %v911 = vmul.f32 %v780, %v901
        %v912 = vmul.f32 %v785, %v901
        %v913 = vmul.f32 %v790, %v901
        %v914 = vmul.f32 %v795, %v901
        %v915 = vmul.f32 %v800, %v901
        %v916 = vmul.f32 %v805, %v901
        %v917 = vmul.f32 %v810, %v901
        %v918 = vmul.f32 %v815, %v901
        %v919 = vmul.f32 %v820, %v901
        %v920 = vmul.f32 %v825, %v901
        %v921 = vmul.f32 %v830, %v901
        %v922 = vmul.f32 %v835, %v901
        %v923 = vmul.f32 %v840, %v901
        %v924 = vmul.f32 %v845, %v901
        %v925 = vmul.f32 %v850, %v901
        %v926 = vmul.f32 %v855, %v901
        %v927 = vmul.f32 %v860, %v901
        %v928 = vmul.f32 %v865, %v901
        %v929 = vmul.f32 %v870, %v901
        %v930 = vmul.f32 %v875, %v901
        %v931 = vmul.f32 %v880, %v901
        %v932 = vmul.f32 %v885, %v901
        %v933 = vmul.f32 %v890, %v901
        %v934 = vmul.f32 %v895, %v901
        %v936 = vlaneseq
        %v937 = vshrl.u32 %v936, 7
        %v938 = vsub.s32 0, %v937
        %v939 = vrot.slane %v736, %v938
        %v941 = vadd.f32 %v903, %v939
        %v942 = vadd.f32 %v904, %v939
        %v943 = vadd.f32 %v905, %v939
        %v944 = vadd.f32 %v906, %v939
        %v945 = vadd.f32 %v907, %v939
        %v946 = vadd.f32 %v908, %v939
        %v947 = vadd.f32 %v909, %v939
        %v948 = vadd.f32 %v910, %v939
        %v949 = vadd.f32 %v911, %v939
        %v950 = vadd.f32 %v912, %v939
        %v951 = vadd.f32 %v913, %v939
        %v952 = vadd.f32 %v914, %v939
        %v953 = vadd.f32 %v915, %v939
        %v954 = vadd.f32 %v916, %v939
        %v955 = vadd.f32 %v917, %v939
        %v956 = vadd.f32 %v918, %v939
        %v957 = vadd.f32 %v919, %v939
        %v958 = vadd.f32 %v920, %v939
        %v959 = vadd.f32 %v921, %v939
        %v960 = vadd.f32 %v922, %v939
        %v961 = vadd.f32 %v923, %v939
        %v962 = vadd.f32 %v924, %v939
        %v963 = vadd.f32 %v925, %v939
        %v964 = vadd.f32 %v926, %v939
        %v965 = vadd.f32 %v927, %v939
        %v966 = vadd.f32 %v928, %v939
        %v967 = vadd.f32 %v929, %v939
        %v968 = vadd.f32 %v930, %v939
        %v969 = vadd.f32 %v931, %v939
        %v970 = vadd.f32 %v932, %v939
        %v971 = vadd.f32 %v933, %v939
        %v972 = vadd.f32 %v934, %v939
        %v973 = vld [vmem:[%s11] sm:$0xff]
        %v974 = vld [vmem:[%s11 + $0x8] sm:$0xff]
        %v975 = vld [vmem:[%s11 + $0x10] sm:$0xff]
        %v976 = vld [vmem:[%s11 + $0x18] sm:$0xff]
        %v977 = vld [vmem:[%s12] sm:$0x1]
        %v979 = vlaneseq
        %v980 = vshrl.u32 %v979, 7
        %v981 = vsub.s32 0, %v980
        %v982 = vrot.slane %v977, %v981
        %v985 = vsel %vm592, %v941, 0
        %v988 = vsel %vm592, %v942, 0
        %v991 = vsel %vm592, %v943, 0
        %v994 = vsel %vm592, %v944, 0
        %v997 = vsel %vm592, %v945, 0
        %v1000 = vsel %vm592, %v946, 0
        %v1003 = vsel %vm592, %v947, 0
        %v1006 = vsel %vm592, %v948, 0
        %v1009 = vsel %vm592, %v949, 0
        %v1012 = vsel %vm592, %v950, 0
        %v1015 = vsel %vm592, %v951, 0
        %v1018 = vsel %vm592, %v952, 0
        %v1021 = vsel %vm592, %v953, 0
        %v1024 = vsel %vm592, %v954, 0
        %v1027 = vsel %vm592, %v955, 0
        %v1030 = vsel %vm592, %v956, 0
        %v1033 = vsel %vm592, %v957, 0
        %v1036 = vsel %vm592, %v958, 0
        %v1039 = vsel %vm592, %v959, 0
        %v1042 = vsel %vm592, %v960, 0
        %v1045 = vsel %vm592, %v961, 0
        %v1048 = vsel %vm592, %v962, 0
        %v1051 = vsel %vm592, %v963, 0
        %v1054 = vsel %vm592, %v964, 0
        %v1057 = vsel %vm592, %v965, 0
        %v1060 = vsel %vm592, %v966, 0
        %v1063 = vsel %vm592, %v967, 0
        %v1066 = vsel %vm592, %v968, 0
        %v1069 = vsel %vm592, %v969, 0
        %v1072 = vsel %vm592, %v970, 0
        %v1075 = vsel %vm592, %v971, 0
        %v1078 = vsel %vm592, %v972, 0
        %1080 = vmatprep.subr.mxu0 0.0
        %1081 = vmatpush1.msra.mxu0 %v973
        %1082 = vmatprep.subr.mxu0 0.0
        %1083 = vmatpush1.msra.mxu0 %v974
        %1084 = vmatprep.subr.mxu0 0.0
        %1085 = vmatpush1.msra.mxu0 %v975
        %1086 = vmatprep.subr.mxu0 0.0
        %1087 = vmatpush1.msra.mxu0 %v976
        %1088 = vmatprep.subr.mxu0 0.0
        %1089 = vmatpush1.msra.mxu0 0.0
        %1090 = vmatprep.subr.mxu0 0.0
        %1091 = vmatpush1.msra.mxu0 0.0
        %1092 = vmatprep.subr.mxu0 0.0
        %1093 = vmatpush1.msra.mxu0 0.0
        %1094 = vmatprep.subr.mxu0 0.0
        %1095 = vmatpush1.msra.mxu0 0.0
        %1096 = vmatprep.subr.mxu0 0.0
        %1097 = vmatpush1.msra.mxu0 0.0
        %1098 = vmatprep.subr.mxu0 0.0
        %1099 = vmatpush1.msra.mxu0 0.0
        %1100 = vmatprep.subr.mxu0 0.0
        %1101 = vmatpush1.msra.mxu0 0.0
        %1102 = vmatprep.subr.mxu0 0.0
        %1103 = vmatpush1.msra.mxu0 0.0
        %1104 = vmatprep.subr.mxu0 0.0
        %1105 = vmatpush1.msra.mxu0 0.0
        %1106 = vmatprep.subr.mxu0 0.0
        %1107 = vmatpush1.msra.mxu0 0.0
        %1108 = vmatprep.subr.mxu0 0.0
        %1109 = vmatpush1.msra.mxu0 0.0
        %1110 = vmatprep.subr.mxu0 0.0
        %1111 = vmatpush1.msra.mxu0 0.0
        %1112 = vmatprep.subr.mxu0 0.0
        %1113 = vmatpush1.msra.mxu0 0.0
        %1114 = vmatprep.subr.mxu0 0.0
        %1115 = vmatpush1.msra.mxu0 0.0
        %1116 = vmatprep.subr.mxu0 0.0
        %1117 = vmatpush1.msra.mxu0 0.0
        %1118 = vmatprep.subr.mxu0 0.0
        %1119 = vmatpush1.msra.mxu0 0.0
        %1120 = vmatprep.subr.mxu0 0.0
        %1121 = vmatpush1.msra.mxu0 0.0
        %1122 = vmatprep.subr.mxu0 0.0
        %1123 = vmatpush1.msra.mxu0 0.0
        %1124 = vmatprep.subr.mxu0 0.0
        %1125 = vmatpush1.msra.mxu0 0.0
        %1126 = vmatprep.subr.mxu0 0.0
        %1127 = vmatpush1.msra.mxu0 0.0
        %1128 = vmatprep.subr.mxu0 0.0
        %1129 = vmatpush1.msra.mxu0 0.0
        %1130 = vmatprep.subr.mxu0 0.0
        %1131 = vmatpush1.msra.mxu0 0.0
        %1132 = vmatprep.subr.mxu0 0.0
        %1133 = vmatpush1.msra.mxu0 0.0
        %1134 = vmatprep.subr.mxu0 0.0
        %1135 = vmatpush1.msra.mxu0 0.0
        %1136 = vmatprep.subr.mxu0 0.0
        %1137 = vmatpush1.msra.mxu0 0.0
        %1138 = vmatprep.subr.mxu0 0.0
        %1139 = vmatpush1.msra.mxu0 0.0
        %1140 = vmatprep.subr.mxu0 0.0
        %1141 = vmatpush1.msra.mxu0 0.0
        %1142 = vmatprep.subr.mxu0 0.0
        %1143 = vmatpush1.msra.mxu0 0.0
        %1144 = vmatprep.mubr.f32.mxu0 0.0
        %1145 = vmatmul.mubr.f32.gmra.mrb[0].mxu0 %v985
        %v1146 = vpop.f32.mrb[0].mxu0
        %v1147 = vadd.f32 %v982, %v1146
        %v1148 = vpop.f32.mrb[0].mxu0
        %1149 = vmatprep.mubr.f32.mxu0 0.0
        %1150 = vmatmul.mubr.f32.gmra.mrb[0].mxu0 %v988
        %v1151 = vpop.f32.mrb[0].mxu0
        %v1152 = vadd.f32 %v982, %v1151
        %v1153 = vpop.f32.mrb[0].mxu0
        %1154 = vmatprep.mubr.f32.mxu0 0.0
        %1155 = vmatmul.mubr.f32.gmra.mrb[0].mxu0 %v991
        %v1156 = vpop.f32.mrb[0].mxu0
        %v1157 = vadd.f32 %v982, %v1156
        %v1158 = vpop.f32.mrb[0].mxu0
        %1159 = vmatprep.mubr.f32.mxu0 0.0
        %1160 = vmatmul.mubr.f32.gmra.mrb[0].mxu0 %v994
        %v1161 = vpop.f32.mrb[0].mxu0
        %v1162 = vadd.f32 %v982, %v1161
        %v1163 = vpop.f32.mrb[0].mxu0
        %1164 = vmatprep.mubr.f32.mxu0 0.0
        %1165 = vmatmul.mubr.f32.gmra.mrb[0].mxu0 %v997
        %v1166 = vpop.f32.mrb[0].mxu0
        %v1167 = vadd.f32 %v982, %v1166
        %v1168 = vpop.f32.mrb[0].mxu0
        %1169 = vmatprep.mubr.f32.mxu0 0.0
        %1170 = vmatmul.mubr.f32.gmra.mrb[0].mxu0 %v1000
        %v1171 = vpop.f32.mrb[0].mxu0
        %v1172 = vadd.f32 %v982, %v1171
        %v1173 = vpop.f32.mrb[0].mxu0
        %1174 = vmatprep.mubr.f32.mxu0 0.0
        %1175 = vmatmul.mubr.f32.gmra.mrb[0].mxu0 %v1003
        %v1176 = vpop.f32.mrb[0].mxu0
        %v1177 = vadd.f32 %v982, %v1176
        %v1178 = vpop.f32.mrb[0].mxu0
        %1179 = vmatprep.mubr.f32.mxu0 0.0
        %1180 = vmatmul.mubr.f32.gmra.mrb[0].mxu0 %v1006
        %v1181 = vpop.f32.mrb[0].mxu0
        %v1182 = vadd.f32 %v982, %v1181
        %v1183 = vpop.f32.mrb[0].mxu0
        %1184 = vmatprep.mubr.f32.mxu0 0.0
        %1185 = vmatmul.mubr.f32.gmra.mrb[0].mxu0 %v1009
        %v1186 = vpop.f32.mrb[0].mxu0
        %v1187 = vadd.f32 %v982, %v1186
        %v1188 = vpop.f32.mrb[0].mxu0
        %1189 = vmatprep.mubr.f32.mxu0 0.0
        %1190 = vmatmul.mubr.f32.gmra.mrb[0].mxu0 %v1012
        %v1191 = vpop.f32.mrb[0].mxu0
        %v1192 = vadd.f32 %v982, %v1191
        %v1193 = vpop.f32.mrb[0].mxu0
        %1194 = vmatprep.mubr.f32.mxu0 0.0
        %1195 = vmatmul.mubr.f32.gmra.mrb[0].mxu0 %v1015
        %v1196 = vpop.f32.mrb[0].mxu0
        %v1197 = vadd.f32 %v982, %v1196
        %v1198 = vpop.f32.mrb[0].mxu0
        %1199 = vmatprep.mubr.f32.mxu0 0.0
        %1200 = vmatmul.mubr.f32.gmra.mrb[0].mxu0 %v1018
        %v1201 = vpop.f32.mrb[0].mxu0
        %v1202 = vadd.f32 %v982, %v1201
        %v1203 = vpop.f32.mrb[0].mxu0
        %1204 = vmatprep.mubr.f32.mxu0 0.0
        %1205 = vmatmul.mubr.f32.gmra.mrb[0].mxu0 %v1021
        %v1206 = vpop.f32.mrb[0].mxu0
        %v1207 = vadd.f32 %v982, %v1206
        %v1208 = vpop.f32.mrb[0].mxu0
        %1209 = vmatprep.mubr.f32.mxu0 0.0
        %1210 = vmatmul.mubr.f32.gmra.mrb[0].mxu0 %v1024
        %v1211 = vpop.f32.mrb[0].mxu0
        %v1212 = vadd.f32 %v982, %v1211
        %v1213 = vpop.f32.mrb[0].mxu0
        %1214 = vmatprep.mubr.f32.mxu0 0.0
        %1215 = vmatmul.mubr.f32.gmra.mrb[0].mxu0 %v1027
        %v1216 = vpop.f32.mrb[0].mxu0
        %v1217 = vadd.f32 %v982, %v1216
        %v1218 = vpop.f32.mrb[0].mxu0
        %1219 = vmatprep.mubr.f32.mxu0 0.0
        %1220 = vmatmul.mubr.f32.gmra.mrb[0].mxu0 %v1030
        %v1221 = vpop.f32.mrb[0].mxu0
        %v1222 = vadd.f32 %v982, %v1221
        %v1223 = vpop.f32.mrb[0].mxu0
        %1224 = vmatprep.mubr.f32.mxu0 0.0
        %1225 = vmatmul.mubr.f32.gmra.mrb[0].mxu0 %v1033
        %v1226 = vpop.f32.mrb[0].mxu0
        %v1227 = vadd.f32 %v982, %v1226
        %v1228 = vpop.f32.mrb[0].mxu0
        %1229 = vmatprep.mubr.f32.mxu0 0.0
        %1230 = vmatmul.mubr.f32.gmra.mrb[0].mxu0 %v1036
        %v1231 = vpop.f32.mrb[0].mxu0
        %v1232 = vadd.f32 %v982, %v1231
        %v1233 = vpop.f32.mrb[0].mxu0
        %1234 = vmatprep.mubr.f32.mxu0 0.0
        %1235 = vmatmul.mubr.f32.gmra.mrb[0].mxu0 %v1039
        %v1236 = vpop.f32.mrb[0].mxu0
        %v1237 = vadd.f32 %v982, %v1236
        %v1238 = vpop.f32.mrb[0].mxu0
        %1239 = vmatprep.mubr.f32.mxu0 0.0
        %1240 = vmatmul.mubr.f32.gmra.mrb[0].mxu0 %v1042
        %v1241 = vpop.f32.mrb[0].mxu0
        %v1242 = vadd.f32 %v982, %v1241
        %v1243 = vpop.f32.mrb[0].mxu0
        %1244 = vmatprep.mubr.f32.mxu0 0.0
        %1245 = vmatmul.mubr.f32.gmra.mrb[0].mxu0 %v1045
        %v1246 = vpop.f32.mrb[0].mxu0
        %v1247 = vadd.f32 %v982, %v1246
        %v1248 = vpop.f32.mrb[0].mxu0
        %1249 = vmatprep.mubr.f32.mxu0 0.0
        %1250 = vmatmul.mubr.f32.gmra.mrb[0].mxu0 %v1048
        %v1251 = vpop.f32.mrb[0].mxu0
        %v1252 = vadd.f32 %v982, %v1251
        %v1253 = vpop.f32.mrb[0].mxu0
        %1254 = vmatprep.mubr.f32.mxu0 0.0
        %1255 = vmatmul.mubr.f32.gmra.mrb[0].mxu0 %v1051
        %v1256 = vpop.f32.mrb[0].mxu0
        %v1257 = vadd.f32 %v982, %v1256
        %v1258 = vpop.f32.mrb[0].mxu0
        %1259 = vmatprep.mubr.f32.mxu0 0.0
        %1260 = vmatmul.mubr.f32.gmra.mrb[0].mxu0 %v1054
        %v1261 = vpop.f32.mrb[0].mxu0
        %v1262 = vadd.f32 %v982, %v1261
        %v1263 = vpop.f32.mrb[0].mxu0
        %1264 = vmatprep.mubr.f32.mxu0 0.0
        %1265 = vmatmul.mubr.f32.gmra.mrb[0].mxu0 %v1057
        %v1266 = vpop.f32.mrb[0].mxu0
        %v1267 = vadd.f32 %v982, %v1266
        %v1268 = vpop.f32.mrb[0].mxu0
        %1269 = vmatprep.mubr.f32.mxu0 0.0
        %1270 = vmatmul.mubr.f32.gmra.mrb[0].mxu0 %v1060
        %v1271 = vpop.f32.mrb[0].mxu0
        %v1272 = vadd.f32 %v982, %v1271
        %v1273 = vpop.f32.mrb[0].mxu0
        %1274 = vmatprep.mubr.f32.mxu0 0.0
        %1275 = vmatmul.mubr.f32.gmra.mrb[0].mxu0 %v1063
        %v1276 = vpop.f32.mrb[0].mxu0
        %v1277 = vadd.f32 %v982, %v1276
        %v1278 = vpop.f32.mrb[0].mxu0
        %1279 = vmatprep.mubr.f32.mxu0 0.0
        %1280 = vmatmul.mubr.f32.gmra.mrb[0].mxu0 %v1066
        %v1281 = vpop.f32.mrb[0].mxu0
        %v1282 = vadd.f32 %v982, %v1281
        %v1283 = vpop.f32.mrb[0].mxu0
        %1284 = vmatprep.mubr.f32.mxu0 0.0
        %1285 = vmatmul.mubr.f32.gmra.mrb[0].mxu0 %v1069
        %v1286 = vpop.f32.mrb[0].mxu0
        %v1287 = vadd.f32 %v982, %v1286
        %v1288 = vpop.f32.mrb[0].mxu0
        %1289 = vmatprep.mubr.f32.mxu0 0.0
        %1290 = vmatmul.mubr.f32.gmra.mrb[0].mxu0 %v1072
        %v1291 = vpop.f32.mrb[0].mxu0
        %v1292 = vadd.f32 %v982, %v1291
        %v1293 = vpop.f32.mrb[0].mxu0
        %1294 = vmatprep.mubr.f32.mxu0 0.0
        %1295 = vmatmul.mubr.f32.gmra.mrb[0].mxu0 %v1075
        %v1296 = vpop.f32.mrb[0].mxu0
        %v1297 = vadd.f32 %v982, %v1296
        %v1298 = vpop.f32.mrb[0].mxu0
        %1299 = vmatprep.mubr.f32.mxu0 0.0
        %1300 = vmatmul.mubr.f32.gmra.mrb[0].mxu0 %v1078
        %v1301 = vpop.f32.mrb[0].mxu0
        %v1302 = vadd.f32 %v982, %v1301
        %v1303 = vpop.f32.mrb[0].mxu0
        %1304 = vdwg.mxu0
        %v1305 = vsel %vm699, %v1147, 0.0
        %v1306 = vsel %vm700, %v1152, 0.0
        %v1307 = vsel %vm701, %v1157, 0.0
        %v1308 = vsel %vm702, %v1162, 0.0
        %v1309 = vsel %vm701, %v1167, 0.0
        %v1310 = vsel %vm702, %v1172, 0.0
        %v1311 = vsel %vm701, %v1177, 0.0
        %v1312 = vsel %vm702, %v1182, 0.0
        %v1313 = vsel %vm701, %v1187, 0.0
        %v1314 = vsel %vm702, %v1192, 0.0
        %v1315 = vsel %vm701, %v1197, 0.0
        %v1316 = vsel %vm702, %v1202, 0.0
        %v1317 = vsel %vm701, %v1207, 0.0
        %v1318 = vsel %vm702, %v1212, 0.0
        %v1319 = vsel %vm701, %v1217, 0.0
        %v1320 = vsel %vm702, %v1222, 0.0
        %v1321 = vsel %vm701, %v1227, 0.0
        %v1322 = vsel %vm702, %v1232, 0.0
        %v1323 = vsel %vm701, %v1237, 0.0
        %v1324 = vsel %vm702, %v1242, 0.0
        %v1325 = vsel %vm699, %v1247, 0.0
        %v1326 = vsel %vm700, %v1252, 0.0
        %v1327 = vsel %vm699, %v1257, 0.0
        %v1328 = vsel %vm700, %v1262, 0.0
        %v1329 = vsel %vm699, %v1267, 0.0
        %v1330 = vsel %vm700, %v1272, 0.0
        %v1331 = vsel %vm699, %v1277, 0.0
        %v1332 = vsel %vm700, %v1282, 0.0
        %v1333 = vsel %vm699, %v1287, 0.0
        %v1334 = vsel %vm700, %v1292, 0.0
        %v1335 = vsel %vm699, %v1297, 0.0
        %v1336 = vsel %vm700, %v1302, 0.0
        %1337 = vst.msk [vmem:[%s528] sm:$0xff] %vm592, %v1305
        %1338 = vst.msk [vmem:[%s528 + $0x8] sm:$0xff] %vm592, %v1306
        %1339 = vst.msk [vmem:[%s528 + $0x10] sm:$0xff] %vm592, %v1307
        %1340 = vst.msk [vmem:[%s528 + $0x18] sm:$0xff] %vm592, %v1308
        %1341 = vst.msk [vmem:[%s528 + $0x20] sm:$0xff] %vm592, %v1309
        %1342 = vst.msk [vmem:[%s528 + $0x28] sm:$0xff] %vm592, %v1310
        %1343 = vst.msk [vmem:[%s528 + $0x30] sm:$0xff] %vm592, %v1311
        %1344 = vst.msk [vmem:[%s528 + $0x38] sm:$0xff] %vm592, %v1312
        %1345 = vst.msk [vmem:[%s528 + $0x40] sm:$0xff] %vm592, %v1313
        %1346 = vst.msk [vmem:[%s528 + $0x48] sm:$0xff] %vm592, %v1314
        %1347 = vst.msk [vmem:[%s528 + $0x50] sm:$0xff] %vm592, %v1315
        %1348 = vst.msk [vmem:[%s528 + $0x58] sm:$0xff] %vm592, %v1316
        %1349 = vst.msk [vmem:[%s528 + $0x60] sm:$0xff] %vm592, %v1317
        %1350 = vst.msk [vmem:[%s528 + $0x68] sm:$0xff] %vm592, %v1318
        %1351 = vst.msk [vmem:[%s528 + $0x70] sm:$0xff] %vm592, %v1319
        %1352 = vst.msk [vmem:[%s528 + $0x78] sm:$0xff] %vm592, %v1320
        %1353 = vst.msk [vmem:[%s528 + $0x80] sm:$0xff] %vm592, %v1321
        %1354 = vst.msk [vmem:[%s528 + $0x88] sm:$0xff] %vm592, %v1322
        %1355 = vst.msk [vmem:[%s528 + $0x90] sm:$0xff] %vm592, %v1323
        %1356 = vst.msk [vmem:[%s528 + $0x98] sm:$0xff] %vm592, %v1324
        %1357 = vst.msk [vmem:[%s528 + $0xa0] sm:$0xff] %vm592, %v1325
        %1358 = vst.msk [vmem:[%s528 + $0xa8] sm:$0xff] %vm592, %v1326
        %1359 = vst.msk [vmem:[%s528 + $0xb0] sm:$0xff] %vm592, %v1327
        %1360 = vst.msk [vmem:[%s528 + $0xb8] sm:$0xff] %vm592, %v1328
        %1361 = vst.msk [vmem:[%s528 + $0xc0] sm:$0xff] %vm592, %v1329
        %1362 = vst.msk [vmem:[%s528 + $0xc8] sm:$0xff] %vm592, %v1330
        %1363 = vst.msk [vmem:[%s528 + $0xd0] sm:$0xff] %vm592, %v1331
        %1364 = vst.msk [vmem:[%s528 + $0xd8] sm:$0xff] %vm592, %v1332
        %1365 = vst.msk [vmem:[%s528 + $0xe0] sm:$0xff] %vm592, %v1333
        %1366 = vst.msk [vmem:[%s528 + $0xe8] sm:$0xff] %vm592, %v1334
        %1367 = vst.msk [vmem:[%s528 + $0xf0] sm:$0xff] %vm592, %v1335
        %1368 = vst.msk [vmem:[%s528 + $0xf8] sm:$0xff] %vm592, %v1336
        %v1369 = vld [vmem:[%s550] sm:$0xff]
        %v1370 = vld [vmem:[%s550 + $0x8] sm:$0xff]
        %v1371 = vld [vmem:[%s550 + $0x10] sm:$0xff]
        %v1372 = vld [vmem:[%s550 + $0x18] sm:$0xff]
        %v1373 = vld [vmem:[%s550 + $0x20] sm:$0xff]
        %v1374 = vld [vmem:[%s550 + $0x28] sm:$0xff]
        %v1375 = vld [vmem:[%s550 + $0x30] sm:$0xff]
        %v1376 = vld [vmem:[%s550 + $0x38] sm:$0xff]
        %v1377 = vld [vmem:[%s550 + $0x40] sm:$0xff]
        %v1378 = vld [vmem:[%s550 + $0x48] sm:$0xff]
        %v1379 = vld [vmem:[%s550 + $0x50] sm:$0xff]
        %v1380 = vld [vmem:[%s550 + $0x58] sm:$0xff]
        %v1381 = vld [vmem:[%s550 + $0x60] sm:$0xff]
        %v1382 = vld [vmem:[%s550 + $0x68] sm:$0xff]
        %v1383 = vld [vmem:[%s550 + $0x70] sm:$0xff]
        %v1384 = vld [vmem:[%s550 + $0x78] sm:$0xff]
        %v1385 = vld [vmem:[%s550 + $0x80] sm:$0xff]
        %v1386 = vld [vmem:[%s550 + $0x88] sm:$0xff]
        %v1387 = vld [vmem:[%s550 + $0x90] sm:$0xff]
        %v1388 = vld [vmem:[%s550 + $0x98] sm:$0xff]
        %v1389 = vld [vmem:[%s550 + $0xa0] sm:$0xff]
        %v1390 = vld [vmem:[%s550 + $0xa8] sm:$0xff]
        %v1391 = vld [vmem:[%s550 + $0xb0] sm:$0xff]
        %v1392 = vld [vmem:[%s550 + $0xb8] sm:$0xff]
        %v1393 = vld [vmem:[%s550 + $0xc0] sm:$0xff]
        %v1394 = vld [vmem:[%s550 + $0xc8] sm:$0xff]
        %v1395 = vld [vmem:[%s550 + $0xd0] sm:$0xff]
        %v1396 = vld [vmem:[%s550 + $0xd8] sm:$0xff]
        %v1397 = vld [vmem:[%s550 + $0xe0] sm:$0xff]
        %v1398 = vld [vmem:[%s550 + $0xe8] sm:$0xff]
        %v1399 = vld [vmem:[%s550 + $0xf0] sm:$0xff]
        %v1400 = vld [vmem:[%s550 + $0xf8] sm:$0xff]
        %v1401 = vld [vmem:[%s7] sm:$0x1]
        %v1402 = vld [vmem:[%s8] sm:$0x1]
        %1404 = vset.pattern.permute.xlu0 0
        %1405 = vperm.xlu0 %1404, %v1369
        %v1406 = vpop.permute.xlu0 %1405
        %1409 = vset.pattern.permute.xlu0 0
        %1410 = vperm.xlu0 %1409, %v1370
        %v1411 = vpop.permute.xlu0 %1410
        %1414 = vset.pattern.permute.xlu0 0
        %1415 = vperm.xlu0 %1414, %v1371
        %v1416 = vpop.permute.xlu0 %1415
        %1419 = vset.pattern.permute.xlu0 0
        %1420 = vperm.xlu0 %1419, %v1372
        %v1421 = vpop.permute.xlu0 %1420
        %1424 = vset.pattern.permute.xlu0 0
        %1425 = vperm.xlu0 %1424, %v1373
        %v1426 = vpop.permute.xlu0 %1425
        %1429 = vset.pattern.permute.xlu0 0
        %1430 = vperm.xlu0 %1429, %v1374
        %v1431 = vpop.permute.xlu0 %1430
        %1434 = vset.pattern.permute.xlu0 0
        %1435 = vperm.xlu0 %1434, %v1375
        %v1436 = vpop.permute.xlu0 %1435
        %1439 = vset.pattern.permute.xlu0 0
        %1440 = vperm.xlu0 %1439, %v1376
        %v1441 = vpop.permute.xlu0 %1440
        %1444 = vset.pattern.permute.xlu0 0
        %1445 = vperm.xlu0 %1444, %v1377
        %v1446 = vpop.permute.xlu0 %1445
        %1449 = vset.pattern.permute.xlu0 0
        %1450 = vperm.xlu0 %1449, %v1378
        %v1451 = vpop.permute.xlu0 %1450
        %1454 = vset.pattern.permute.xlu0 0
        %1455 = vperm.xlu0 %1454, %v1379
        %v1456 = vpop.permute.xlu0 %1455
        %1459 = vset.pattern.permute.xlu0 0
        %1460 = vperm.xlu0 %1459, %v1380
        %v1461 = vpop.permute.xlu0 %1460
        %1464 = vset.pattern.permute.xlu0 0
        %1465 = vperm.xlu0 %1464, %v1381
        %v1466 = vpop.permute.xlu0 %1465
        %1469 = vset.pattern.permute.xlu0 0
        %1470 = vperm.xlu0 %1469, %v1382
        %v1471 = vpop.permute.xlu0 %1470
        %1474 = vset.pattern.permute.xlu0 0
        %1475 = vperm.xlu0 %1474, %v1383
        %v1476 = vpop.permute.xlu0 %1475
        %1479 = vset.pattern.permute.xlu0 0
        %1480 = vperm.xlu0 %1479, %v1384
        %v1481 = vpop.permute.xlu0 %1480
        %1484 = vset.pattern.permute.xlu0 0
        %1485 = vperm.xlu0 %1484, %v1385
        %v1486 = vpop.permute.xlu0 %1485
        %1489 = vset.pattern.permute.xlu0 0
        %1490 = vperm.xlu0 %1489, %v1386
        %v1491 = vpop.permute.xlu0 %1490
        %1494 = vset.pattern.permute.xlu0 0
        %1495 = vperm.xlu0 %1494, %v1387
        %v1496 = vpop.permute.xlu0 %1495
        %1499 = vset.pattern.permute.xlu0 0
        %1500 = vperm.xlu0 %1499, %v1388
        %v1501 = vpop.permute.xlu0 %1500
        %1504 = vset.pattern.permute.xlu0 0
        %1505 = vperm.xlu0 %1504, %v1389
        %v1506 = vpop.permute.xlu0 %1505
        %1509 = vset.pattern.permute.xlu0 0
        %1510 = vperm.xlu0 %1509, %v1390
        %v1511 = vpop.permute.xlu0 %1510
        %1514 = vset.pattern.permute.xlu0 0
        %1515 = vperm.xlu0 %1514, %v1391
        %v1516 = vpop.permute.xlu0 %1515
        %1519 = vset.pattern.permute.xlu0 0
        %1520 = vperm.xlu0 %1519, %v1392
        %v1521 = vpop.permute.xlu0 %1520
        %1524 = vset.pattern.permute.xlu0 0
        %1525 = vperm.xlu0 %1524, %v1393
        %v1526 = vpop.permute.xlu0 %1525
        %1529 = vset.pattern.permute.xlu0 0
        %1530 = vperm.xlu0 %1529, %v1394
        %v1531 = vpop.permute.xlu0 %1530
        %1534 = vset.pattern.permute.xlu0 0
        %1535 = vperm.xlu0 %1534, %v1395
        %v1536 = vpop.permute.xlu0 %1535
        %1539 = vset.pattern.permute.xlu0 0
        %1540 = vperm.xlu0 %1539, %v1396
        %v1541 = vpop.permute.xlu0 %1540
        %1544 = vset.pattern.permute.xlu0 0
        %1545 = vperm.xlu0 %1544, %v1397
        %v1546 = vpop.permute.xlu0 %1545
        %1549 = vset.pattern.permute.xlu0 0
        %1550 = vperm.xlu0 %1549, %v1398
        %v1551 = vpop.permute.xlu0 %1550
        %1554 = vset.pattern.permute.xlu0 0
        %1555 = vperm.xlu0 %1554, %v1399
        %v1556 = vpop.permute.xlu0 %1555
        %1559 = vset.pattern.permute.xlu0 0
        %1560 = vperm.xlu0 %1559, %v1400
        %v1561 = vpop.permute.xlu0 %1560
        %v1564 = vlaneseq
        %v1565 = vshrl.u32 %v1564, 7
        %v1566 = vsub.s32 0, %v1565
        %v1567 = vrot.slane %v1401, %v1566
        %v1569 = vmul.f32 %v1406, %v1567
        %v1570 = vmul.f32 %v1411, %v1567
        %v1571 = vmul.f32 %v1416, %v1567
        %v1572 = vmul.f32 %v1421, %v1567
        %v1573 = vmul.f32 %v1426, %v1567
        %v1574 = vmul.f32 %v1431, %v1567
        %v1575 = vmul.f32 %v1436, %v1567
        %v1576 = vmul.f32 %v1441, %v1567
        %v1577 = vmul.f32 %v1446, %v1567
        %v1578 = vmul.f32 %v1451, %v1567
        %v1579 = vmul.f32 %v1456, %v1567
        %v1580 = vmul.f32 %v1461, %v1567
        %v1581 = vmul.f32 %v1466, %v1567
        %v1582 = vmul.f32 %v1471, %v1567
        %v1583 = vmul.f32 %v1476, %v1567
        %v1584 = vmul.f32 %v1481, %v1567
        %v1585 = vmul.f32 %v1486, %v1567
        %v1586 = vmul.f32 %v1491, %v1567
        %v1587 = vmul.f32 %v1496, %v1567
        %v1588 = vmul.f32 %v1501, %v1567
        %v1589 = vmul.f32 %v1506, %v1567
        %v1590 = vmul.f32 %v1511, %v1567
        %v1591 = vmul.f32 %v1516, %v1567
        %v1592 = vmul.f32 %v1521, %v1567
        %v1593 = vmul.f32 %v1526, %v1567
        %v1594 = vmul.f32 %v1531, %v1567
        %v1595 = vmul.f32 %v1536, %v1567
        %v1596 = vmul.f32 %v1541, %v1567
        %v1597 = vmul.f32 %v1546, %v1567
        %v1598 = vmul.f32 %v1551, %v1567
        %v1599 = vmul.f32 %v1556, %v1567
        %v1600 = vmul.f32 %v1561, %v1567
        %v1602 = vlaneseq
        %v1603 = vshrl.u32 %v1602, 7
        %v1604 = vsub.s32 0, %v1603
        %v1605 = vrot.slane %v1402, %v1604
        %v1607 = vadd.f32 %v1569, %v1605
        %v1608 = vadd.f32 %v1570, %v1605
        %v1609 = vadd.f32 %v1571, %v1605
        %v1610 = vadd.f32 %v1572, %v1605
        %v1611 = vadd.f32 %v1573, %v1605
        %v1612 = vadd.f32 %v1574, %v1605
        %v1613 = vadd.f32 %v1575, %v1605
        %v1614 = vadd.f32 %v1576, %v1605
        %v1615 = vadd.f32 %v1577, %v1605
        %v1616 = vadd.f32 %v1578, %v1605
        %v1617 = vadd.f32 %v1579, %v1605
        %v1618 = vadd.f32 %v1580, %v1605
        %v1619 = vadd.f32 %v1581, %v1605
        %v1620 = vadd.f32 %v1582, %v1605
        %v1621 = vadd.f32 %v1583, %v1605
        %v1622 = vadd.f32 %v1584, %v1605
        %v1623 = vadd.f32 %v1585, %v1605
        %v1624 = vadd.f32 %v1586, %v1605
        %v1625 = vadd.f32 %v1587, %v1605
        %v1626 = vadd.f32 %v1588, %v1605
        %v1627 = vadd.f32 %v1589, %v1605
        %v1628 = vadd.f32 %v1590, %v1605
        %v1629 = vadd.f32 %v1591, %v1605
        %v1630 = vadd.f32 %v1592, %v1605
        %v1631 = vadd.f32 %v1593, %v1605
        %v1632 = vadd.f32 %v1594, %v1605
        %v1633 = vadd.f32 %v1595, %v1605
        %v1634 = vadd.f32 %v1596, %v1605
        %v1635 = vadd.f32 %v1597, %v1605
        %v1636 = vadd.f32 %v1598, %v1605
        %v1637 = vadd.f32 %v1599, %v1605
        %v1638 = vadd.f32 %v1600, %v1605
        %v1639 = vld [vmem:[%s11] sm:$0xff]
        %v1640 = vld [vmem:[%s11 + $0x8] sm:$0xff]
        %v1641 = vld [vmem:[%s11 + $0x10] sm:$0xff]
        %v1642 = vld [vmem:[%s11 + $0x18] sm:$0xff]
        %v1643 = vld [vmem:[%s12] sm:$0x1]
        %v1645 = vlaneseq
        %v1646 = vshrl.u32 %v1645, 7
        %v1647 = vsub.s32 0, %v1646
        %v1648 = vrot.slane %v1643, %v1647
        %v1651 = vsel %vm592, %v1607, 0
        %v1654 = vsel %vm592, %v1608, 0
        %v1657 = vsel %vm592, %v1609, 0
        %v1660 = vsel %vm592, %v1610, 0
        %v1663 = vsel %vm592, %v1611, 0
        %v1666 = vsel %vm592, %v1612, 0
        %v1669 = vsel %vm592, %v1613, 0
        %v1672 = vsel %vm592, %v1614, 0
        %v1675 = vsel %vm592, %v1615, 0
        %v1678 = vsel %vm592, %v1616, 0
        %v1681 = vsel %vm592, %v1617, 0
        %v1684 = vsel %vm592, %v1618, 0
        %v1687 = vsel %vm592, %v1619, 0
        %v1690 = vsel %vm592, %v1620, 0
        %v1693 = vsel %vm592, %v1621, 0
        %v1696 = vsel %vm592, %v1622, 0
        %v1699 = vsel %vm592, %v1623, 0
        %v1702 = vsel %vm592, %v1624, 0
        %v1705 = vsel %vm592, %v1625, 0
        %v1708 = vsel %vm592, %v1626, 0
        %v1711 = vsel %vm592, %v1627, 0
        %v1714 = vsel %vm592, %v1628, 0
        %v1717 = vsel %vm592, %v1629, 0
        %v1720 = vsel %vm592, %v1630, 0
        %v1723 = vsel %vm592, %v1631, 0
        %v1726 = vsel %vm592, %v1632, 0
        %v1729 = vsel %vm592, %v1633, 0
        %v1732 = vsel %vm592, %v1634, 0
        %v1735 = vsel %vm592, %v1635, 0
        %v1738 = vsel %vm592, %v1636, 0
        %v1741 = vsel %vm592, %v1637, 0
        %v1744 = vsel %vm592, %v1638, 0
        %1746 = vmatprep.subr.mxu0 0.0
        %1747 = vmatpush1.msra.mxu0 %v1639
        %1748 = vmatprep.subr.mxu0 0.0
        %1749 = vmatpush1.msra.mxu0 %v1640
        %1750 = vmatprep.subr.mxu0 0.0
        %1751 = vmatpush1.msra.mxu0 %v1641
        %1752 = vmatprep.subr.mxu0 0.0
        %1753 = vmatpush1.msra.mxu0 %v1642
        %1754 = vmatprep.subr.mxu0 0.0
        %1755 = vmatpush1.msra.mxu0 0.0
        %1756 = vmatprep.subr.mxu0 0.0
        %1757 = vmatpush1.msra.mxu0 0.0
        %1758 = vmatprep.subr.mxu0 0.0
        %1759 = vmatpush1.msra.mxu0 0.0
        %1760 = vmatprep.subr.mxu0 0.0
        %1761 = vmatpush1.msra.mxu0 0.0
        %1762 = vmatprep.subr.mxu0 0.0
        %1763 = vmatpush1.msra.mxu0 0.0
        %1764 = vmatprep.subr.mxu0 0.0
        %1765 = vmatpush1.msra.mxu0 0.0
        %1766 = vmatprep.subr.mxu0 0.0
        %1767 = vmatpush1.msra.mxu0 0.0
        %1768 = vmatprep.subr.mxu0 0.0
        %1769 = vmatpush1.msra.mxu0 0.0
        %1770 = vmatprep.subr.mxu0 0.0
        %1771 = vmatpush1.msra.mxu0 0.0
        %1772 = vmatprep.subr.mxu0 0.0
        %1773 = vmatpush1.msra.mxu0 0.0
        %1774 = vmatprep.subr.mxu0 0.0
        %1775 = vmatpush1.msra.mxu0 0.0
        %1776 = vmatprep.subr.mxu0 0.0
        %1777 = vmatpush1.msra.mxu0 0.0
        %1778 = vmatprep.subr.mxu0 0.0
        %1779 = vmatpush1.msra.mxu0 0.0
        %1780 = vmatprep.subr.mxu0 0.0
        %1781 = vmatpush1.msra.mxu0 0.0
        %1782 = vmatprep.subr.mxu0 0.0
        %1783 = vmatpush1.msra.mxu0 0.0
        %1784 = vmatprep.subr.mxu0 0.0
        %1785 = vmatpush1.msra.mxu0 0.0
        %1786 = vmatprep.subr.mxu0 0.0
        %1787 = vmatpush1.msra.mxu0 0.0
        %1788 = vmatprep.subr.mxu0 0.0
        %1789 = vmatpush1.msra.mxu0 0.0
        %1790 = vmatprep.subr.mxu0 0.0
        %1791 = vmatpush1.msra.mxu0 0.0
        %1792 = vmatprep.subr.mxu0 0.0
        %1793 = vmatpush1.msra.mxu0 0.0
        %1794 = vmatprep.subr.mxu0 0.0
        %1795 = vmatpush1.msra.mxu0 0.0
        %1796 = vmatprep.subr.mxu0 0.0
        %1797 = vmatpush1.msra.mxu0 0.0
        %1798 = vmatprep.subr.mxu0 0.0
        %1799 = vmatpush1.msra.mxu0 0.0
        %1800 = vmatprep.subr.mxu0 0.0
        %1801 = vmatpush1.msra.mxu0 0.0
        %1802 = vmatprep.subr.mxu0 0.0
        %1803 = vmatpush1.msra.mxu0 0.0
        %1804 = vmatprep.subr.mxu0 0.0
        %1805 = vmatpush1.msra.mxu0 0.0
        %1806 = vmatprep.subr.mxu0 0.0
        %1807 = vmatpush1.msra.mxu0 0.0
        %1808 = vmatprep.subr.mxu0 0.0
        %1809 = vmatpush1.msra.mxu0 0.0
        %1810 = vmatprep.mubr.f32.mxu0 0.0
        %1811 = vmatmul.mubr.f32.gmra.mrb[0].mxu0 %v1651
        %v1812 = vpop.f32.mrb[0].mxu0
        %v1813 = vadd.f32 %v1648, %v1812
        %v1814 = vpop.f32.mrb[0].mxu0
        %1815 = vmatprep.mubr.f32.mxu0 0.0
        %1816 = vmatmul.mubr.f32.gmra.mrb[0].mxu0 %v1654
        %v1817 = vpop.f32.mrb[0].mxu0
        %v1818 = vadd.f32 %v1648, %v1817
        %v1819 = vpop.f32.mrb[0].mxu0
        %1820 = vmatprep.mubr.f32.mxu0 0.0
        %1821 = vmatmul.mubr.f32.gmra.mrb[0].mxu0 %v1657
        %v1822 = vpop.f32.mrb[0].mxu0
        %v1823 = vadd.f32 %v1648, %v1822
        %v1824 = vpop.f32.mrb[0].mxu0
        %1825 = vmatprep.mubr.f32.mxu0 0.0
        %1826 = vmatmul.mubr.f32.gmra.mrb[0].mxu0 %v1660
        %v1827 = vpop.f32.mrb[0].mxu0
        %v1828 = vadd.f32 %v1648, %v1827
        %v1829 = vpop.f32.mrb[0].mxu0
        %1830 = vmatprep.mubr.f32.mxu0 0.0
        %1831 = vmatmul.mubr.f32.gmra.mrb[0].mxu0 %v1663
        %v1832 = vpop.f32.mrb[0].mxu0
        %v1833 = vadd.f32 %v1648, %v1832
        %v1834 = vpop.f32.mrb[0].mxu0
        %1835 = vmatprep.mubr.f32.mxu0 0.0
        %1836 = vmatmul.mubr.f32.gmra.mrb[0].mxu0 %v1666
        %v1837 = vpop.f32.mrb[0].mxu0
        %v1838 = vadd.f32 %v1648, %v1837
        %v1839 = vpop.f32.mrb[0].mxu0
        %1840 = vmatprep.mubr.f32.mxu0 0.0
        %1841 = vmatmul.mubr.f32.gmra.mrb[0].mxu0 %v1669
        %v1842 = vpop.f32.mrb[0].mxu0
        %v1843 = vadd.f32 %v1648, %v1842
        %v1844 = vpop.f32.mrb[0].mxu0
        %1845 = vmatprep.mubr.f32.mxu0 0.0
        %1846 = vmatmul.mubr.f32.gmra.mrb[0].mxu0 %v1672
        %v1847 = vpop.f32.mrb[0].mxu0
        %v1848 = vadd.f32 %v1648, %v1847
        %v1849 = vpop.f32.mrb[0].mxu0
        %1850 = vmatprep.mubr.f32.mxu0 0.0
        %1851 = vmatmul.mubr.f32.gmra.mrb[0].mxu0 %v1675
        %v1852 = vpop.f32.mrb[0].mxu0
        %v1853 = vadd.f32 %v1648, %v1852
        %v1854 = vpop.f32.mrb[0].mxu0
        %1855 = vmatprep.mubr.f32.mxu0 0.0
        %1856 = vmatmul.mubr.f32.gmra.mrb[0].mxu0 %v1678
        %v1857 = vpop.f32.mrb[0].mxu0
        %v1858 = vadd.f32 %v1648, %v1857
        %v1859 = vpop.f32.mrb[0].mxu0
        %1860 = vmatprep.mubr.f32.mxu0 0.0
        %1861 = vmatmul.mubr.f32.gmra.mrb[0].mxu0 %v1681
        %v1862 = vpop.f32.mrb[0].mxu0
        %v1863 = vadd.f32 %v1648, %v1862
        %v1864 = vpop.f32.mrb[0].mxu0
        %1865 = vmatprep.mubr.f32.mxu0 0.0
        %1866 = vmatmul.mubr.f32.gmra.mrb[0].mxu0 %v1684
        %v1867 = vpop.f32.mrb[0].mxu0
        %v1868 = vadd.f32 %v1648, %v1867
        %v1869 = vpop.f32.mrb[0].mxu0
        %1870 = vmatprep.mubr.f32.mxu0 0.0
        %1871 = vmatmul.mubr.f32.gmra.mrb[0].mxu0 %v1687
        %v1872 = vpop.f32.mrb[0].mxu0
        %v1873 = vadd.f32 %v1648, %v1872
        %v1874 = vpop.f32.mrb[0].mxu0
        %1875 = vmatprep.mubr.f32.mxu0 0.0
        %1876 = vmatmul.mubr.f32.gmra.mrb[0].mxu0 %v1690
        %v1877 = vpop.f32.mrb[0].mxu0
        %v1878 = vadd.f32 %v1648, %v1877
        %v1879 = vpop.f32.mrb[0].mxu0
        %1880 = vmatprep.mubr.f32.mxu0 0.0
        %1881 = vmatmul.mubr.f32.gmra.mrb[0].mxu0 %v1693
        %v1882 = vpop.f32.mrb[0].mxu0
        %v1883 = vadd.f32 %v1648, %v1882
        %v1884 = vpop.f32.mrb[0].mxu0
        %1885 = vmatprep.mubr.f32.mxu0 0.0
        %1886 = vmatmul.mubr.f32.gmra.mrb[0].mxu0 %v1696
        %v1887 = vpop.f32.mrb[0].mxu0
        %v1888 = vadd.f32 %v1648, %v1887
        %v1889 = vpop.f32.mrb[0].mxu0
        %1890 = vmatprep.mubr.f32.mxu0 0.0
        %1891 = vmatmul.mubr.f32.gmra.mrb[0].mxu0 %v1699
        %v1892 = vpop.f32.mrb[0].mxu0
        %v1893 = vadd.f32 %v1648, %v1892
        %v1894 = vpop.f32.mrb[0].mxu0
        %1895 = vmatprep.mubr.f32.mxu0 0.0
        %1896 = vmatmul.mubr.f32.gmra.mrb[0].mxu0 %v1702
        %v1897 = vpop.f32.mrb[0].mxu0
        %v1898 = vadd.f32 %v1648, %v1897
        %v1899 = vpop.f32.mrb[0].mxu0
        %1900 = vmatprep.mubr.f32.mxu0 0.0
        %1901 = vmatmul.mubr.f32.gmra.mrb[0].mxu0 %v1705
        %v1902 = vpop.f32.mrb[0].mxu0
        %v1903 = vadd.f32 %v1648, %v1902
        %v1904 = vpop.f32.mrb[0].mxu0
        %1905 = vmatprep.mubr.f32.mxu0 0.0
        %1906 = vmatmul.mubr.f32.gmra.mrb[0].mxu0 %v1708
        %v1907 = vpop.f32.mrb[0].mxu0
        %v1908 = vadd.f32 %v1648, %v1907
        %v1909 = vpop.f32.mrb[0].mxu0
        %1910 = vmatprep.mubr.f32.mxu0 0.0
        %1911 = vmatmul.mubr.f32.gmra.mrb[0].mxu0 %v1711
        %v1912 = vpop.f32.mrb[0].mxu0
        %v1913 = vadd.f32 %v1648, %v1912
        %v1914 = vpop.f32.mrb[0].mxu0
        %1915 = vmatprep.mubr.f32.mxu0 0.0
        %1916 = vmatmul.mubr.f32.gmra.mrb[0].mxu0 %v1714
        %v1917 = vpop.f32.mrb[0].mxu0
        %v1918 = vadd.f32 %v1648, %v1917
        %v1919 = vpop.f32.mrb[0].mxu0
        %1920 = vmatprep.mubr.f32.mxu0 0.0
        %1921 = vmatmul.mubr.f32.gmra.mrb[0].mxu0 %v1717
        %v1922 = vpop.f32.mrb[0].mxu0
        %v1923 = vadd.f32 %v1648, %v1922
        %v1924 = vpop.f32.mrb[0].mxu0
        %1925 = vmatprep.mubr.f32.mxu0 0.0
        %1926 = vmatmul.mubr.f32.gmra.mrb[0].mxu0 %v1720
        %v1927 = vpop.f32.mrb[0].mxu0
        %v1928 = vadd.f32 %v1648, %v1927
        %v1929 = vpop.f32.mrb[0].mxu0
        %1930 = vmatprep.mubr.f32.mxu0 0.0
        %1931 = vmatmul.mubr.f32.gmra.mrb[0].mxu0 %v1723
        %v1932 = vpop.f32.mrb[0].mxu0
        %v1933 = vadd.f32 %v1648, %v1932
        %v1934 = vpop.f32.mrb[0].mxu0
        %1935 = vmatprep.mubr.f32.mxu0 0.0
        %1936 = vmatmul.mubr.f32.gmra.mrb[0].mxu0 %v1726
        %v1937 = vpop.f32.mrb[0].mxu0
        %v1938 = vadd.f32 %v1648, %v1937
        %v1939 = vpop.f32.mrb[0].mxu0
        %1940 = vmatprep.mubr.f32.mxu0 0.0
        %1941 = vmatmul.mubr.f32.gmra.mrb[0].mxu0 %v1729
        %v1942 = vpop.f32.mrb[0].mxu0
        %v1943 = vadd.f32 %v1648, %v1942
        %v1944 = vpop.f32.mrb[0].mxu0
        %1945 = vmatprep.mubr.f32.mxu0 0.0
        %1946 = vmatmul.mubr.f32.gmra.mrb[0].mxu0 %v1732
        %v1947 = vpop.f32.mrb[0].mxu0
        %v1948 = vadd.f32 %v1648, %v1947
        %v1949 = vpop.f32.mrb[0].mxu0
        %1950 = vmatprep.mubr.f32.mxu0 0.0
        %1951 = vmatmul.mubr.f32.gmra.mrb[0].mxu0 %v1735
        %v1952 = vpop.f32.mrb[0].mxu0
        %v1953 = vadd.f32 %v1648, %v1952
        %v1954 = vpop.f32.mrb[0].mxu0
        %1955 = vmatprep.mubr.f32.mxu0 0.0
        %1956 = vmatmul.mubr.f32.gmra.mrb[0].mxu0 %v1738
        %v1957 = vpop.f32.mrb[0].mxu0
        %v1958 = vadd.f32 %v1648, %v1957
        %v1959 = vpop.f32.mrb[0].mxu0
        %1960 = vmatprep.mubr.f32.mxu0 0.0
        %1961 = vmatmul.mubr.f32.gmra.mrb[0].mxu0 %v1741
        %v1962 = vpop.f32.mrb[0].mxu0
        %v1963 = vadd.f32 %v1648, %v1962
        %v1964 = vpop.f32.mrb[0].mxu0
        %1965 = vmatprep.mubr.f32.mxu0 0.0
        %1966 = vmatmul.mubr.f32.gmra.mrb[0].mxu0 %v1744
        %v1967 = vpop.f32.mrb[0].mxu0
        %v1968 = vadd.f32 %v1648, %v1967
        %v1969 = vpop.f32.mrb[0].mxu0
        %1970 = vdwg.mxu0
        %v1971 = vsel %vm699, %v1813, 0.0
        %v1972 = vsel %vm700, %v1818, 0.0
        %v1973 = vsel %vm701, %v1823, 0.0
        %v1974 = vsel %vm702, %v1828, 0.0
        %v1975 = vsel %vm701, %v1833, 0.0
        %v1976 = vsel %vm702, %v1838, 0.0
        %v1977 = vsel %vm701, %v1843, 0.0
        %v1978 = vsel %vm702, %v1848, 0.0
        %v1979 = vsel %vm701, %v1853, 0.0
        %v1980 = vsel %vm702, %v1858, 0.0
        %v1981 = vsel %vm701, %v1863, 0.0
        %v1982 = vsel %vm702, %v1868, 0.0
        %v1983 = vsel %vm701, %v1873, 0.0
        %v1984 = vsel %vm702, %v1878, 0.0
        %v1985 = vsel %vm701, %v1883, 0.0
        %v1986 = vsel %vm702, %v1888, 0.0
        %v1987 = vsel %vm701, %v1893, 0.0
        %v1988 = vsel %vm702, %v1898, 0.0
        %v1989 = vsel %vm701, %v1903, 0.0
        %v1990 = vsel %vm702, %v1908, 0.0
        %v1991 = vsel %vm699, %v1913, 0.0
        %v1992 = vsel %vm700, %v1918, 0.0
        %v1993 = vsel %vm699, %v1923, 0.0
        %v1994 = vsel %vm700, %v1928, 0.0
        %v1995 = vsel %vm699, %v1933, 0.0
        %v1996 = vsel %vm700, %v1938, 0.0
        %v1997 = vsel %vm699, %v1943, 0.0
        %v1998 = vsel %vm700, %v1948, 0.0
        %v1999 = vsel %vm699, %v1953, 0.0
        %v2000 = vsel %vm700, %v1958, 0.0
        %v2001 = vsel %vm699, %v1963, 0.0
        %v2002 = vsel %vm700, %v1968, 0.0
        %2003 = vst.msk [vmem:[%s535] sm:$0xff] %vm592, %v1971
        %2004 = vst.msk [vmem:[%s535 + $0x8] sm:$0xff] %vm592, %v1972
        %2005 = vst.msk [vmem:[%s535 + $0x10] sm:$0xff] %vm592, %v1973
        %2006 = vst.msk [vmem:[%s535 + $0x18] sm:$0xff] %vm592, %v1974
        %2007 = vst.msk [vmem:[%s535 + $0x20] sm:$0xff] %vm592, %v1975
        %2008 = vst.msk [vmem:[%s535 + $0x28] sm:$0xff] %vm592, %v1976
        %2009 = vst.msk [vmem:[%s535 + $0x30] sm:$0xff] %vm592, %v1977
        %2010 = vst.msk [vmem:[%s535 + $0x38] sm:$0xff] %vm592, %v1978
        %2011 = vst.msk [vmem:[%s535 + $0x40] sm:$0xff] %vm592, %v1979
        %2012 = vst.msk [vmem:[%s535 + $0x48] sm:$0xff] %vm592, %v1980
        %2013 = vst.msk [vmem:[%s535 + $0x50] sm:$0xff] %vm592, %v1981
        %2014 = vst.msk [vmem:[%s535 + $0x58] sm:$0xff] %vm592, %v1982
        %2015 = vst.msk [vmem:[%s535 + $0x60] sm:$0xff] %vm592, %v1983
        %2016 = vst.msk [vmem:[%s535 + $0x68] sm:$0xff] %vm592, %v1984
        %2017 = vst.msk [vmem:[%s535 + $0x70] sm:$0xff] %vm592, %v1985
        %2018 = vst.msk [vmem:[%s535 + $0x78] sm:$0xff] %vm592, %v1986
        %2019 = vst.msk [vmem:[%s535 + $0x80] sm:$0xff] %vm592, %v1987
        %2020 = vst.msk [vmem:[%s535 + $0x88] sm:$0xff] %vm592, %v1988
        %2021 = vst.msk [vmem:[%s535 + $0x90] sm:$0xff] %vm592, %v1989
        %2022 = vst.msk [vmem:[%s535 + $0x98] sm:$0xff] %vm592, %v1990
        %2023 = vst.msk [vmem:[%s535 + $0xa0] sm:$0xff] %vm592, %v1991
        %2024 = vst.msk [vmem:[%s535 + $0xa8] sm:$0xff] %vm592, %v1992
        %2025 = vst.msk [vmem:[%s535 + $0xb0] sm:$0xff] %vm592, %v1993
        %2026 = vst.msk [vmem:[%s535 + $0xb8] sm:$0xff] %vm592, %v1994
        %2027 = vst.msk [vmem:[%s535 + $0xc0] sm:$0xff] %vm592, %v1995
        %2028 = vst.msk [vmem:[%s535 + $0xc8] sm:$0xff] %vm592, %v1996
        %2029 = vst.msk [vmem:[%s535 + $0xd0] sm:$0xff] %vm592, %v1997
        %2030 = vst.msk [vmem:[%s535 + $0xd8] sm:$0xff] %vm592, %v1998
        %2031 = vst.msk [vmem:[%s535 + $0xe0] sm:$0xff] %vm592, %v1999
        %2032 = vst.msk [vmem:[%s535 + $0xe8] sm:$0xff] %vm592, %v2000
        %2033 = vst.msk [vmem:[%s535 + $0xf0] sm:$0xff] %vm592, %v2001
        %2034 = vst.msk [vmem:[%s535 + $0xf8] sm:$0xff] %vm592, %v2002
        %s2035 = sand.u32 %s329, 1
        %s2036 = scalar_lea.sflag [#allocation3], %s2035
        %s2037 = sand.u32 %s329, 1
        %s2038 = smul.addr %s2037, 16
        %s2039 = scalar_lea.vmem [#allocation2], %s2038
        %s2040 = sand.u32 %s33, 1
        %s2041 = scalar_lea.sflag [#allocation5], %s2040
        %s2042 = sand.u32 %s355, 1
        %s2043 = smul.addr %s2042, 256
        %s2044 = scalar_lea.vmem [#allocation4], %s2043
        %s2045 = sand.u32 %s33, 1
        %s2046 = scalar_lea.sflag [#allocation5], %s2045
        %s2047 = sand.u32 %s381, 1
        %s2048 = smul.addr %s2047, 256
        %s2049 = scalar_lea.vmem [#allocation6], %s2048
        // Predicated region
        $region73: #{tpu_custom_call.1} parent=71 // pred_check
          %p2050 = pneg %p339
        $region74: #{tpu_custom_call.1} parent=71 // pred_check_branch
          %2052 = sbr.rel (%p2050) target = $region76
        $region75: #{tpu_custom_call.1} parent=71 // pred_region
          %s2054 = ssub.s32 256, 256
          %2055 = vsyncadd %s2036, %s2054
          %s2056 = smul.addr %s33, 2
          %s2057 = smul.addr %s2056, 128
          %s2058 = scalar_lea.hbm %s13, %s2057
          %s2059 = sshll.u32 %s2039, 4
          %s2060 = int_to_ptr.vmem [resolvable:$true] %s2059
          %2065 = dma.vmem_to_hbm [thread:$0]  %s2060, 256, %s2058, %s2036, 128, 128, 8
        $region76: #{tpu_custom_call.1} parent=71 // pred_fallthru
          _
        // Predicated region
        $region77: #{tpu_custom_call.1} parent=71 // pred_check
          %p2066 = pneg %p365
        $region78: #{tpu_custom_call.1} parent=71 // pred_check_branch
          %2068 = sbr.rel (%p2066) target = $region80
        $region79: #{tpu_custom_call.1} parent=71 // pred_region
          %s2070 = ssub.s32 4096, 4096
          %2071 = vsyncadd %s2041, %s2070
          %s2072 = smul.addr %s33, 32
          %s2073 = smul.addr %s2072, 128
          %s2074 = scalar_lea.hbm %s14, %s2073
          %s2075 = sshll.u32 %s2044, 4
          %s2076 = int_to_ptr.vmem [resolvable:$true] %s2075
          %2081 = dma.vmem_to_hbm [thread:$0]  %s2076, 4096, %s2074, %s2041, 128, 128, 8
        $region80: #{tpu_custom_call.1} parent=71 // pred_fallthru
          _
        // Predicated region
        $region81: #{tpu_custom_call.1} parent=71 // pred_check
          %p2082 = pneg %p391
        $region82: #{tpu_custom_call.1} parent=71 // pred_check_branch
          %2084 = sbr.rel (%p2082) target = $region84
        $region83: #{tpu_custom_call.1} parent=71 // pred_region
          %s2086 = ssub.s32 4096, 4096
          %2087 = vsyncadd %s2046, %s2086
          %s2088 = smul.addr %s33, 32
          %s2089 = smul.addr %s2088, 128
          %s2090 = scalar_lea.hbm %s15, %s2089
          %s2091 = sshll.u32 %s2049, 4
          %s2092 = int_to_ptr.vmem [resolvable:$true] %s2091
          %2097 = dma.vmem_to_hbm [thread:$0]  %s2092, 4096, %s2090, %s2046, 128, 128, 8
        $region84: #{tpu_custom_call.1} parent=71 // pred_fallthru
          _
      $region72: #{tpu_custom_call.1} parent=5 // pred_fallthru
        _
      %p2098 = scmp.le.s32.totalorder 2, %s28
      // Predicated region
      $region85: #{tpu_custom_call.1} parent=5 // pred_check
        %p2099 = pneg %p2098
      $region86: #{tpu_custom_call.1} parent=5 // pred_check_branch
        %2101 = sbr.rel (%p2099) target = $region88
      $region87: #{tpu_custom_call.1} parent=5 // pred_region
        %s2102 = ssub.s32 %s28, 2
        // Predicated region
        $region89: #{tpu_custom_call.1} parent=87 // pred_check
          %p2103 = pneg %p345
        $region90: #{tpu_custom_call.1} parent=87 // pred_check_branch
          %2105 = sbr.rel (%p2103) target = $region92
        $region91: #{tpu_custom_call.1} parent=87 // pred_region
          %s2106 = sand.u32 %s330, 1
          %s2107 = scalar_lea.sflag [#allocation3], %s2106
          %s2108 = sand.u32 %s330, 1
          %s2109 = smul.addr %s2108, 16
          %s2110 = scalar_lea.vmem [#allocation2], %s2109
          %2111 = dma.done %s2107, 256
        $region92: #{tpu_custom_call.1} parent=87 // pred_fallthru
          _
        // Predicated region
        $region93: #{tpu_custom_call.1} parent=87 // pred_check
          %p2112 = pneg %p371
        $region94: #{tpu_custom_call.1} parent=87 // pred_check_branch
          %2114 = sbr.rel (%p2112) target = $region96
        $region95: #{tpu_custom_call.1} parent=87 // pred_region
          %s2115 = sand.u32 %s34, 1
          %s2116 = scalar_lea.sflag [#allocation5], %s2115
          %s2117 = sand.u32 %s356, 1
          %s2118 = smul.addr %s2117, 256
          %s2119 = scalar_lea.vmem [#allocation4], %s2118
          %2120 = dma.done %s2116, 4096
        $region96: #{tpu_custom_call.1} parent=87 // pred_fallthru
          _
        // Predicated region
        $region97: #{tpu_custom_call.1} parent=87 // pred_check
          %p2121 = pneg %p397
        $region98: #{tpu_custom_call.1} parent=87 // pred_check_branch
          %2123 = sbr.rel (%p2121) target = $region100
        $region99: #{tpu_custom_call.1} parent=87 // pred_region
          %s2124 = sand.u32 %s34, 1
          %s2125 = scalar_lea.sflag [#allocation5], %s2124
          %s2126 = sand.u32 %s382, 1
          %s2127 = smul.addr %s2126, 256
          %s2128 = scalar_lea.vmem [#allocation6], %s2127
          %2129 = dma.done %s2125, 4096
        $region100: #{tpu_custom_call.1} parent=87 // pred_fallthru
          _
      $region88: #{tpu_custom_call.1} parent=5 // pred_fallthru
        _
    $region6: #{tpu_custom_call.1} parent=1 // loop_footer
      %s32 = sadd.s32 1, %s28
    $region7: #{tpu_custom_call.1} parent=1 // loop_footer_branch
      %27 = sbr.rel target = $region3
    $region8: #{tpu_custom_call.1} parent=1 // loop_exit
      _
    %2130 = vsyncpa [#allocation3], 1
    %s2131 = scalar_lea.sflag [#allocation3], 1
    %2132 = vsyncpa %s2131, 1
    %2133 = vsyncpa [#allocation5], 1
    %s2134 = scalar_lea.sflag [#allocation5], 1
    %2135 = vsyncpa %s2134, 1

</llo_original>
